<compile_context>
chip_gen: v7x
topology: tpu7x:2x2x1
jax: 0.10.0
libtpu: 0.0.40
codegen_flags: <defaults>
</compile_context>

<pallas_src>
import jax
import jax.numpy as jnp
from jax import lax
from jax.experimental import pallas as pl
from jax.experimental.pallas import tpu as pltpu
import numpy as np


GATE_PAD = 128   # padded per-gate lane width (lane-aligned); holds pi(H) + v(H) + zeros


def _a2c_kernel(x_ref, wih_ref, whh_ref, b_ref,
                wpi_ref, bpi_ref, wv_ref, bv_ref,
                pi_out_ref, v_out_ref, hhist_ref):
    """Fused pi/v LSTM recurrence (block-diagonal weights) + linear heads.

    Packed layouts (built host-side in pack_params):
      wih : (I, 4G)  gate-major [i|f|g|o]; inside each G block: pi cols 0:H, v cols H:2H, rest 0
      whh : (P, 4G)  block-diagonal: rows 0:H feed pi cols, rows H:2H feed v cols, rest 0 (P == G)
      b   : (1, 4G)  fused b_ih + b_hh, same column layout
      wpi : (P, n_actions)  rows 0:H = pi head weights, rest 0
      wv  : (P, 1)          rows H:2H = v head weights, rest 0
    Padded lanes stay exactly zero through the recurrence (i=f=o=sigmoid(0)=0.5,
    g=tanh(0)=0, c starts at 0), so they contribute nothing to the heads.
    """
    T = x_ref.shape[0]
    P = whh_ref.shape[0]          # padded fused-state width (= GATE_PAD)
    G = whh_ref.shape[1] // 4     # padded per-gate width (= GATE_PAD)

    # (1) Hoisted input projections + fused biases for BOTH LSTMs: one MXU matmul
    #     with M=T instead of two M=1 matmuls (+ bias adds) per timestep.
    pre = jnp.dot(x_ref[...], wih_ref[...],
                  preferred_element_type=jnp.float32) + b_ref[...]      # (T, 4G)

    h = jnp.zeros((1, P), jnp.float32)    # [h_pi | h_v | 0]
    c = jnp.zeros((1, P), jnp.float32)    # [c_pi | c_v | 0]

    # (2)+(4) Single fused recurrence, fully unrolled (static Python loop, T=8).
    # whh_ref[...] is re-read per step on purpose: the 256 KB slab is loop-invariant
    # and off the carry dependence chain (loads overlap); holding it as one live
    # value across the unrolled loop would only force register spills.
    for t in range(T):
        gates = pre[t:t + 1, :] + jnp.dot(h, whh_ref[...],
                                          preferred_element_type=jnp.float32)   # (1, 4G)
        # (6) 128-aligned whole-vreg gate slices: no cross-lane shuffles per step.
        i = jax.nn.sigmoid(gates[:, 0 * G:1 * G])
        f = jax.nn.sigmoid(gates[:, 1 * G:2 * G])
        g = jnp.tanh(gates[:, 2 * G:3 * G])
        o = jax.nn.sigmoid(gates[:, 3 * G:4 * G])
        c = f * c + i * g
        h = o * jnp.tanh(c)
        # (3) only record h; heads and (lane-sparse) output stores happen post-loop.
        hhist_ref[pl.ds(t, 1), :] = h

    # (3) Heads with M=T on the MXU + one store per output.
    hs = hhist_ref[...]                                                  # (T, P)
    pi_out_ref[...] = (jnp.dot(hs, wpi_ref[...], preferred_element_type=jnp.float32)
                       + bpi_ref[...])
    v_out_ref[...] = (jnp.dot(hs, wv_ref[...], preferred_element_type=jnp.float32)
                      + bv_ref[...])


def pack_params(params, gate_pad=GATE_PAD):
    """Pack natural LSTM/head params into the fused, lane-aligned kernel layout."""
    H = params["whh_pi"].shape[0]
    I = params["wih_pi"].shape[0]
    n_actions = params["w_pi"].shape[1]
    G = gate_pad
    assert 2 * H <= G, "fused state (2H) must fit inside one padded gate block"
    P = G
    wih = jnp.zeros((I, 4 * G), jnp.float32)
    whh = jnp.zeros((P, 4 * G), jnp.float32)
    b = jnp.zeros((1, 4 * G), jnp.float32)
    for g in range(4):  # PyTorch LSTM gate order [i, f, g, o]
        wih = wih.at[:, g * G:g * G + H].set(params["wih_pi"][:, g * H:(g + 1) * H])
        wih = wih.at[:, g * G + H:g * G + 2 * H].set(params["wih_v"][:, g * H:(g + 1) * H])
        whh = whh.at[:H, g * G:g * G + H].set(params["whh_pi"][:, g * H:(g + 1) * H])
        whh = whh.at[H:2 * H, g * G + H:g * G + 2 * H].set(params["whh_v"][:, g * H:(g + 1) * H])
        b = b.at[:, g * G:g * G + H].set(params["b_pi1"][:, g * H:(g + 1) * H])
        b = b.at[:, g * G + H:g * G + 2 * H].set(params["b_v1"][:, g * H:(g + 1) * H])
    wpi = jnp.zeros((P, n_actions), jnp.float32).at[:H, :].set(params["w_pi"])
    wv = jnp.zeros((P, 1), jnp.float32).at[H:2 * H, :].set(params["w_v"])
    # TODO(synk): optional bf16 weight storage for v6e/v7x (halves weight vld bytes);
    # kept f32 so the f32 reference check holds and v5e needs no special-casing.
    return dict(wih=wih, whh=whh, b=b, wpi=wpi, wv=wv,
                bpi=params["b_pi"], bv=params["b_v"])


def a2c_forward(x, params):
    """Pallas implementation of A2C.forward: returns (pi2, v2)."""
    T, _ = x.shape
    n_actions = params["w_pi"].shape[1]
    packed = pack_params(params)
    P = packed["whh"].shape[0]
    vmem = pl.BlockSpec(memory_space=pltpu.MemorySpace.VMEM)
    pi2, v2 = pl.pallas_call(
        _a2c_kernel,
        out_shape=(jax.ShapeDtypeStruct((T, n_actions), jnp.float32),
                   jax.ShapeDtypeStruct((T, 1), jnp.float32)),
        in_specs=[vmem] * 8,
        out_specs=(vmem, vmem),
        scratch_shapes=[pltpu.VMEM((T, P), jnp.float32)],
        # No grid / tiling / pl.Buffered: total footprint ~300 KB, latency-bound on
        # the serial recurrence; per-grid-step overhead would dominate (opt 7).
    )(x, packed["wih"], packed["whh"], packed["b"],
      packed["wpi"], packed["bpi"], packed["wv"], packed["bv"])
    return pi2, v2


def a2c_forward_ref(x, params):
    """Pure-JAX reference (same math, natural layout) for a correctness check."""
    H = params["whh_pi"].shape[0]

    def lstm(xs, wih, whh, b):
        def step(carry, x_t):
            h, c = carry
            gates = x_t[None, :] @ wih + h @ whh + b
            i, f, g, o = jnp.split(gates, 4, axis=1)
            i, f, o = jax.nn.sigmoid(i), jax.nn.sigmoid(f), jax.nn.sigmoid(o)
            g = jnp.tanh(g)
            c = f * c + i * g
            h = o * jnp.tanh(c)
            return (h, c), h[0]
        _, hs = lax.scan(step, (jnp.zeros((1, H)), jnp.zeros((1, H))), xs)
        return hs

    h_p = lstm(x, params["wih_pi"], params["whh_pi"], params["b_pi1"])
    h_v = lstm(x, params["wih_v"], params["whh_v"], params["b_v1"])
    pi2 = h_p @ params["w_pi"] + params["b_pi"]
    v2 = h_v @ params["w_v"] + params["b_v"]
    return pi2, v2


def init_params(key, input_size=3, hidden_size=48, n_actions=2):
    # PyTorch default init: uniform(-1/sqrt(H), 1/sqrt(H)) for LSTM and Linear(48, .)
    k = 1.0 / float(np.sqrt(hidden_size))
    keys = jax.random.split(key, 12)
    u = lambda kk, shape: jax.random.uniform(kk, shape, jnp.float32, -k, k)
    return dict(
        wih_pi=u(keys[0], (input_size, 4 * hidden_size)),
        whh_pi=u(keys[1], (hidden_size, 4 * hidden_size)),
        b_pi1=u(keys[2], (1, 4 * hidden_size)) + u(keys[3], (1, 4 * hidden_size)),  # b_ih + b_hh
        wih_v=u(keys[4], (input_size, 4 * hidden_size)),
        whh_v=u(keys[5], (hidden_size, 4 * hidden_size)),
        b_v1=u(keys[6], (1, 4 * hidden_size)) + u(keys[7], (1, 4 * hidden_size)),
        w_pi=u(keys[8], (hidden_size, n_actions)),
        b_pi=u(keys[9], (1, n_actions)),
        w_v=u(keys[10], (hidden_size, 1)),
        b_v=u(keys[11], (1, 1)),
    )


if __name__ == "__main__":
    key = jax.random.PRNGKey(0)
    pkey, xkey = jax.random.split(key)

    hidden_size, n_actions, input_size = 48, 2, 3
    params = init_params(pkey, input_size=input_size,
                         hidden_size=hidden_size, n_actions=n_actions)

    # Sequence of "x" vectors as produced by form_x: [reward, onehot(action)] rows.
    # The module's default self.x is [[0, 1, 0]]; we run a length-8 sequence.
    T = 8
    x = jax.random.uniform(xkey, (T, input_size), jnp.float32, -1.0, 1.0)
    x = x.at[0].set(jnp.array([0.0, 1.0, 0.0], jnp.float32))

    pi2, v2 = a2c_forward(x, params)
    jax.block_until_ready((pi2, v2))

    pi_ref, v_ref = a2c_forward_ref(x, params)
    np.testing.assert_allclose(np.asarray(pi2), np.asarray(pi_ref), rtol=1e-4, atol=1e-4)
    np.testing.assert_allclose(np.asarray(v2), np.asarray(v_ref), rtol=1e-4, atol=1e-4)
    assert pi2.shape == (T, n_actions) and v2.shape == (T, 1)

    print("KERNEL_OK")
</pallas_src>

<mosaic_0001>
module attributes {stable_mosaic.version = 11 : i64} {
  func.func @_a2c_kernel(%arg0: memref<8x3xf32, #tpu.memory_space<vmem>>, %arg1: memref<3x512xf32, #tpu.memory_space<vmem>>, %arg2: memref<128x512xf32, #tpu.memory_space<vmem>>, %arg3: memref<1x512xf32, #tpu.memory_space<vmem>>, %arg4: memref<128x2xf32, #tpu.memory_space<vmem>>, %arg5: memref<1x2xf32, #tpu.memory_space<vmem>>, %arg6: memref<128x1xf32, #tpu.memory_space<vmem>>, %arg7: memref<1x1xf32, #tpu.memory_space<vmem>>, %arg8: memref<8x2xf32, #tpu.memory_space<vmem>>, %arg9: memref<8x1xf32, #tpu.memory_space<vmem>>, %arg10: memref<8x128xf32, #tpu.memory_space<vmem>>) attributes {dimension_semantics = [], scalar_prefetch = 0 : i64, scratch_operands = 1 : i64, tpu.core_type = #tpu.core_type<tc>} {
    %c0 = arith.constant 0 : index
    %c0_0 = arith.constant 0 : index
    %0 = vector.load %arg0[%c0, %c0_0] : memref<8x3xf32, #tpu.memory_space<vmem>>, vector<8x3xf32>
    %c0_1 = arith.constant 0 : index
    %c0_2 = arith.constant 0 : index
    %1 = vector.load %arg1[%c0_1, %c0_2] : memref<3x512xf32, #tpu.memory_space<vmem>>, vector<3x512xf32>
    %cst = arith.constant dense<0.000000e+00> : vector<8x512xf32>
    %2 = tpu.matmul %0, %1, %cst {dimension_numbers = #tpu.dot_dimension_numbers<[1], [0], [0], [1], [0, 0, 1, 1], [], []>} : vector<8x3xf32>, vector<3x512xf32>, vector<8x512xf32> -> vector<8x512xf32>
    %c0_3 = arith.constant 0 : index
    %c0_4 = arith.constant 0 : index
    %3 = vector.load %arg3[%c0_3, %c0_4] : memref<1x512xf32, #tpu.memory_space<vmem>>, vector<1x512xf32>
    %4 = vector.broadcast %3 : vector<1x512xf32> to vector<8x512xf32>
    %5 = arith.addf %2, %4 : vector<8x512xf32>
    %cst_5 = arith.constant 0.000000e+00 : f32
    %6 = vector.broadcast %cst_5 : f32 to vector<1x128xf32>
    %cst_6 = arith.constant 0.000000e+00 : f32
    %7 = vector.broadcast %cst_6 : f32 to vector<1x128xf32>
    %8 = vector.extract_strided_slice %5 {offsets = [0, 0], sizes = [1, 512], strides = [1, 1]} : vector<8x512xf32> to vector<1x512xf32>
    %c0_7 = arith.constant 0 : index
    %c0_8 = arith.constant 0 : index
    %9 = vector.load %arg2[%c0_7, %c0_8] : memref<128x512xf32, #tpu.memory_space<vmem>>, vector<128x512xf32>
    %cst_9 = arith.constant dense<0.000000e+00> : vector<1x512xf32>
    %10 = tpu.matmul %6, %9, %cst_9 {dimension_numbers = #tpu.dot_dimension_numbers<[1], [0], [0], [1], [0, 0, 1, 1], [], []>} : vector<1x128xf32>, vector<128x512xf32>, vector<1x512xf32> -> vector<1x512xf32>
    %11 = arith.addf %8, %10 : vector<1x512xf32>
    %12 = vector.extract_strided_slice %11 {offsets = [0, 0], sizes = [1, 128], strides = [1, 1]} : vector<1x512xf32> to vector<1x128xf32>
    %13 = arith.negf %12 : vector<1x128xf32>
    %14 = math.exp %13 : vector<1x128xf32>
    %cst_10 = arith.constant 1.000000e+00 : f32
    %15 = vector.broadcast %cst_10 : f32 to vector<1x128xf32>
    %16 = arith.addf %15, %14 : vector<1x128xf32>
    %17 = arith.divf %15, %16 : vector<1x128xf32>
    %18 = vector.extract_strided_slice %11 {offsets = [0, 128], sizes = [1, 128], strides = [1, 1]} : vector<1x512xf32> to vector<1x128xf32>
    %19 = arith.negf %18 : vector<1x128xf32>
    %20 = math.exp %19 : vector<1x128xf32>
    %cst_11 = arith.constant 1.000000e+00 : f32
    %21 = vector.broadcast %cst_11 : f32 to vector<1x128xf32>
    %22 = arith.addf %21, %20 : vector<1x128xf32>
    %23 = arith.divf %21, %22 : vector<1x128xf32>
    %24 = vector.extract_strided_slice %11 {offsets = [0, 256], sizes = [1, 128], strides = [1, 1]} : vector<1x512xf32> to vector<1x128xf32>
    %25 = math.tanh %24 : vector<1x128xf32>
    %26 = vector.extract_strided_slice %11 {offsets = [0, 384], sizes = [1, 128], strides = [1, 1]} : vector<1x512xf32> to vector<1x128xf32>
    %27 = arith.negf %26 : vector<1x128xf32>
    %28 = math.exp %27 : vector<1x128xf32>
    %cst_12 = arith.constant 1.000000e+00 : f32
    %29 = vector.broadcast %cst_12 : f32 to vector<1x128xf32>
    %30 = arith.addf %29, %28 : vector<1x128xf32>
    %31 = arith.divf %29, %30 : vector<1x128xf32>
    %32 = arith.mulf %23, %7 : vector<1x128xf32>
    %33 = arith.mulf %17, %25 : vector<1x128xf32>
    %34 = arith.addf %32, %33 : vector<1x128xf32>
    %35 = math.tanh %34 : vector<1x128xf32>
    %36 = arith.mulf %31, %35 : vector<1x128xf32>
    %c0_13 = arith.constant 0 : index
    %c0_14 = arith.constant 0 : index
    %37 = vector.load %arg10[%c0_13, %c0_14] : memref<8x128xf32, #tpu.memory_space<vmem>>, vector<1x128xf32>
    tpu.vector_store %arg10[%c0_13, %c0_14], %36 {strides = array<i32>} : memref<8x128xf32, #tpu.memory_space<vmem>>, vector<1x128xf32>,
    %38 = vector.extract_strided_slice %5 {offsets = [1, 0], sizes = [1, 512], strides = [1, 1]} : vector<8x512xf32> to vector<1x512xf32>
    %c0_15 = arith.constant 0 : index
    %c0_16 = arith.constant 0 : index
    %39 = vector.load %arg2[%c0_15, %c0_16] : memref<128x512xf32, #tpu.memory_space<vmem>>, vector<128x512xf32>
    %cst_17 = arith.constant dense<0.000000e+00> : vector<1x512xf32>
    %40 = tpu.matmul %36, %39, %cst_17 {dimension_numbers = #tpu.dot_dimension_numbers<[1], [0], [0], [1], [0, 0, 1, 1], [], []>} : vector<1x128xf32>, vector<128x512xf32>, vector<1x512xf32> -> vector<1x512xf32>
    %41 = arith.addf %38, %40 : vector<1x512xf32>
    %42 = vector.extract_strided_slice %41 {offsets = [0, 0], sizes = [1, 128], strides = [1, 1]} : vector<1x512xf32> to vector<1x128xf32>
    %43 = arith.negf %42 : vector<1x128xf32>
    %44 = math.exp %43 : vector<1x128xf32>
    %cst_18 = arith.constant 1.000000e+00 : f32
    %45 = vector.broadcast %cst_18 : f32 to vector<1x128xf32>
    %46 = arith.addf %45, %44 : vector<1x128xf32>
    %47 = arith.divf %45, %46 : vector<1x128xf32>
    %48 = vector.extract_strided_slice %41 {offsets = [0, 128], sizes = [1, 128], strides = [1, 1]} : vector<1x512xf32> to vector<1x128xf32>
    %49 = arith.negf %48 : vector<1x128xf32>
    %50 = math.exp %49 : vector<1x128xf32>
    %cst_19 = arith.constant 1.000000e+00 : f32
    %51 = vector.broadcast %cst_19 : f32 to vector<1x128xf32>
    %52 = arith.addf %51, %50 : vector<1x128xf32>
    %53 = arith.divf %51, %52 : vector<1x128xf32>
    %54 = vector.extract_strided_slice %41 {offsets = [0, 256], sizes = [1, 128], strides = [1, 1]} : vector<1x512xf32> to vector<1x128xf32>
    %55 = math.tanh %54 : vector<1x128xf32>
    %56 = vector.extract_strided_slice %41 {offsets = [0, 384], sizes = [1, 128], strides = [1, 1]} : vector<1x512xf32> to vector<1x128xf32>
    %57 = arith.negf %56 : vector<1x128xf32>
    %58 = math.exp %57 : vector<1x128xf32>
    %cst_20 = arith.constant 1.000000e+00 : f32
    %59 = vector.broadcast %cst_20 : f32 to vector<1x128xf32>
    %60 = arith.addf %59, %58 : vector<1x128xf32>
    %61 = arith.divf %59, %60 : vector<1x128xf32>
    %62 = arith.mulf %53, %34 : vector<1x128xf32>
    %63 = arith.mulf %47, %55 : vector<1x128xf32>
    %64 = arith.addf %62, %63 : vector<1x128xf32>
    %65 = math.tanh %64 : vector<1x128xf32>
    %66 = arith.mulf %61, %65 : vector<1x128xf32>
    %c1 = arith.constant 1 : index
    %c0_21 = arith.constant 0 : index
    %67 = vector.load %arg10[%c1, %c0_21] : memref<8x128xf32, #tpu.memory_space<vmem>>, vector<1x128xf32>
    tpu.vector_store %arg10[%c1, %c0_21], %66 {strides = array<i32>} : memref<8x128xf32, #tpu.memory_space<vmem>>, vector<1x128xf32>,
    %68 = vector.extract_strided_slice %5 {offsets = [2, 0], sizes = [1, 512], strides = [1, 1]} : vector<8x512xf32> to vector<1x512xf32>
    %c0_22 = arith.constant 0 : index
    %c0_23 = arith.constant 0 : index
    %69 = vector.load %arg2[%c0_22, %c0_23] : memref<128x512xf32, #tpu.memory_space<vmem>>, vector<128x512xf32>
    %cst_24 = arith.constant dense<0.000000e+00> : vector<1x512xf32>
    %70 = tpu.matmul %66, %69, %cst_24 {dimension_numbers = #tpu.dot_dimension_numbers<[1], [0], [0], [1], [0, 0, 1, 1], [], []>} : vector<1x128xf32>, vector<128x512xf32>, vector<1x512xf32> -> vector<1x512xf32>
    %71 = arith.addf %68, %70 : vector<1x512xf32>
    %72 = vector.extract_strided_slice %71 {offsets = [0, 0], sizes = [1, 128], strides = [1, 1]} : vector<1x512xf32> to vector<1x128xf32>
    %73 = arith.negf %72 : vector<1x128xf32>
    %74 = math.exp %73 : vector<1x128xf32>
    %cst_25 = arith.constant 1.000000e+00 : f32
    %75 = vector.broadcast %cst_25 : f32 to vector<1x128xf32>
    %76 = arith.addf %75, %74 : vector<1x128xf32>
    %77 = arith.divf %75, %76 : vector<1x128xf32>
    %78 = vector.extract_strided_slice %71 {offsets = [0, 128], sizes = [1, 128], strides = [1, 1]} : vector<1x512xf32> to vector<1x128xf32>
    %79 = arith.negf %78 : vector<1x128xf32>
    %80 = math.exp %79 : vector<1x128xf32>
    %cst_26 = arith.constant 1.000000e+00 : f32
    %81 = vector.broadcast %cst_26 : f32 to vector<1x128xf32>
    %82 = arith.addf %81, %80 : vector<1x128xf32>
    %83 = arith.divf %81, %82 : vector<1x128xf32>
    %84 = vector.extract_strided_slice %71 {offsets = [0, 256], sizes = [1, 128], strides = [1, 1]} : vector<1x512xf32> to vector<1x128xf32>
    %85 = math.tanh %84 : vector<1x128xf32>
    %86 = vector.extract_strided_slice %71 {offsets = [0, 384], sizes = [1, 128], strides = [1, 1]} : vector<1x512xf32> to vector<1x128xf32>
    %87 = arith.negf %86 : vector<1x128xf32>
    %88 = math.exp %87 : vector<1x128xf32>
    %cst_27 = arith.constant 1.000000e+00 : f32
    %89 = vector.broadcast %cst_27 : f32 to vector<1x128xf32>
    %90 = arith.addf %89, %88 : vector<1x128xf32>
    %91 = arith.divf %89, %90 : vector<1x128xf32>
    %92 = arith.mulf %83, %64 : vector<1x128xf32>
    %93 = arith.mulf %77, %85 : vector<1x128xf32>
    %94 = arith.addf %92, %93 : vector<1x128xf32>
    %95 = math.tanh %94 : vector<1x128xf32>
    %96 = arith.mulf %91, %95 : vector<1x128xf32>
    %c2 = arith.constant 2 : index
    %c0_28 = arith.constant 0 : index
    %97 = vector.load %arg10[%c2, %c0_28] : memref<8x128xf32, #tpu.memory_space<vmem>>, vector<1x128xf32>
    tpu.vector_store %arg10[%c2, %c0_28], %96 {strides = array<i32>} : memref<8x128xf32, #tpu.memory_space<vmem>>, vector<1x128xf32>,
    %98 = vector.extract_strided_slice %5 {offsets = [3, 0], sizes = [1, 512], strides = [1, 1]} : vector<8x512xf32> to vector<1x512xf32>
    %c0_29 = arith.constant 0 : index
    %c0_30 = arith.constant 0 : index
    %99 = vector.load %arg2[%c0_29, %c0_30] : memref<128x512xf32, #tpu.memory_space<vmem>>, vector<128x512xf32>
    %cst_31 = arith.constant dense<0.000000e+00> : vector<1x512xf32>
    %100 = tpu.matmul %96, %99, %cst_31 {dimension_numbers = #tpu.dot_dimension_numbers<[1], [0], [0], [1], [0, 0, 1, 1], [], []>} : vector<1x128xf32>, vector<128x512xf32>, vector<1x512xf32> -> vector<1x512xf32>
    %101 = arith.addf %98, %100 : vector<1x512xf32>
    %102 = vector.extract_strided_slice %101 {offsets = [0, 0], sizes = [1, 128], strides = [1, 1]} : vector<1x512xf32> to vector<1x128xf32>
    %103 = arith.negf %102 : vector<1x128xf32>
    %104 = math.exp %103 : vector<1x128xf32>
    %cst_32 = arith.constant 1.000000e+00 : f32
    %105 = vector.broadcast %cst_32 : f32 to vector<1x128xf32>
    %106 = arith.addf %105, %104 : vector<1x128xf32>
    %107 = arith.divf %105, %106 : vector<1x128xf32>
    %108 = vector.extract_strided_slice %101 {offsets = [0, 128], sizes = [1, 128], strides = [1, 1]} : vector<1x512xf32> to vector<1x128xf32>
    %109 = arith.negf %108 : vector<1x128xf32>
    %110 = math.exp %109 : vector<1x128xf32>
    %cst_33 = arith.constant 1.000000e+00 : f32
    %111 = vector.broadcast %cst_33 : f32 to vector<1x128xf32>
    %112 = arith.addf %111, %110 : vector<1x128xf32>
    %113 = arith.divf %111, %112 : vector<1x128xf32>
    %114 = vector.extract_strided_slice %101 {offsets = [0, 256], sizes = [1, 128], strides = [1, 1]} : vector<1x512xf32> to vector<1x128xf32>
    %115 = math.tanh %114 : vector<1x128xf32>
    %116 = vector.extract_strided_slice %101 {offsets = [0, 384], sizes = [1, 128], strides = [1, 1]} : vector<1x512xf32> to vector<1x128xf32>
    %117 = arith.negf %116 : vector<1x128xf32>
    %118 = math.exp %117 : vector<1x128xf32>
    %cst_34 = arith.constant 1.000000e+00 : f32
    %119 = vector.broadcast %cst_34 : f32 to vector<1x128xf32>
    %120 = arith.addf %119, %118 : vector<1x128xf32>
    %121 = arith.divf %119, %120 : vector<1x128xf32>
    %122 = arith.mulf %113, %94 : vector<1x128xf32>
    %123 = arith.mulf %107, %115 : vector<1x128xf32>
    %124 = arith.addf %122, %123 : vector<1x128xf32>
    %125 = math.tanh %124 : vector<1x128xf32>
    %126 = arith.mulf %121, %125 : vector<1x128xf32>
    %c3 = arith.constant 3 : index
    %c0_35 = arith.constant 0 : index
    %127 = vector.load %arg10[%c3, %c0_35] : memref<8x128xf32, #tpu.memory_space<vmem>>, vector<1x128xf32>
    tpu.vector_store %arg10[%c3, %c0_35], %126 {strides = array<i32>} : memref<8x128xf32, #tpu.memory_space<vmem>>, vector<1x128xf32>,
    %128 = vector.extract_strided_slice %5 {offsets = [4, 0], sizes = [1, 512], strides = [1, 1]} : vector<8x512xf32> to vector<1x512xf32>
    %c0_36 = arith.constant 0 : index
    %c0_37 = arith.constant 0 : index
    %129 = vector.load %arg2[%c0_36, %c0_37] : memref<128x512xf32, #tpu.memory_space<vmem>>, vector<128x512xf32>
    %cst_38 = arith.constant dense<0.000000e+00> : vector<1x512xf32>
    %130 = tpu.matmul %126, %129, %cst_38 {dimension_numbers = #tpu.dot_dimension_numbers<[1], [0], [0], [1], [0, 0, 1, 1], [], []>} : vector<1x128xf32>, vector<128x512xf32>, vector<1x512xf32> -> vector<1x512xf32>
    %131 = arith.addf %128, %130 : vector<1x512xf32>
    %132 = vector.extract_strided_slice %131 {offsets = [0, 0], sizes = [1, 128], strides = [1, 1]} : vector<1x512xf32> to vector<1x128xf32>
    %133 = arith.negf %132 : vector<1x128xf32>
    %134 = math.exp %133 : vector<1x128xf32>
    %cst_39 = arith.constant 1.000000e+00 : f32
    %135 = vector.broadcast %cst_39 : f32 to vector<1x128xf32>
    %136 = arith.addf %135, %134 : vector<1x128xf32>
    %137 = arith.divf %135, %136 : vector<1x128xf32>
    %138 = vector.extract_strided_slice %131 {offsets = [0, 128], sizes = [1, 128], strides = [1, 1]} : vector<1x512xf32> to vector<1x128xf32>
    %139 = arith.negf %138 : vector<1x128xf32>
    %140 = math.exp %139 : vector<1x128xf32>
    %cst_40 = arith.constant 1.000000e+00 : f32
    %141 = vector.broadcast %cst_40 : f32 to vector<1x128xf32>
    %142 = arith.addf %141, %140 : vector<1x128xf32>
    %143 = arith.divf %141, %142 : vector<1x128xf32>
    %144 = vector.extract_strided_slice %131 {offsets = [0, 256], sizes = [1, 128], strides = [1, 1]} : vector<1x512xf32> to vector<1x128xf32>
    %145 = math.tanh %144 : vector<1x128xf32>
    %146 = vector.extract_strided_slice %131 {offsets = [0, 384], sizes = [1, 128], strides = [1, 1]} : vector<1x512xf32> to vector<1x128xf32>
    %147 = arith.negf %146 : vector<1x128xf32>
    %148 = math.exp %147 : vector<1x128xf32>
    %cst_41 = arith.constant 1.000000e+00 : f32
    %149 = vector.broadcast %cst_41 : f32 to vector<1x128xf32>
    %150 = arith.addf %149, %148 : vector<1x128xf32>
    %151 = arith.divf %149, %150 : vector<1x128xf32>
    %152 = arith.mulf %143, %124 : vector<1x128xf32>
    %153 = arith.mulf %137, %145 : vector<1x128xf32>
    %154 = arith.addf %152, %153 : vector<1x128xf32>
    %155 = math.tanh %154 : vector<1x128xf32>
    %156 = arith.mulf %151, %155 : vector<1x128xf32>
    %c4 = arith.constant 4 : index
    %c0_42 = arith.constant 0 : index
    %157 = vector.load %arg10[%c4, %c0_42] : memref<8x128xf32, #tpu.memory_space<vmem>>, vector<1x128xf32>
    tpu.vector_store %arg10[%c4, %c0_42], %156 {strides = array<i32>} : memref<8x128xf32, #tpu.memory_space<vmem>>, vector<1x128xf32>,
    %158 = vector.extract_strided_slice %5 {offsets = [5, 0], sizes = [1, 512], strides = [1, 1]} : vector<8x512xf32> to vector<1x512xf32>
    %c0_43 = arith.constant 0 : index
    %c0_44 = arith.constant 0 : index
    %159 = vector.load %arg2[%c0_43, %c0_44] : memref<128x512xf32, #tpu.memory_space<vmem>>, vector<128x512xf32>
    %cst_45 = arith.constant dense<0.000000e+00> : vector<1x512xf32>
    %160 = tpu.matmul %156, %159, %cst_45 {dimension_numbers = #tpu.dot_dimension_numbers<[1], [0], [0], [1], [0, 0, 1, 1], [], []>} : vector<1x128xf32>, vector<128x512xf32>, vector<1x512xf32> -> vector<1x512xf32>
    %161 = arith.addf %158, %160 : vector<1x512xf32>
    %162 = vector.extract_strided_slice %161 {offsets = [0, 0], sizes = [1, 128], strides = [1, 1]} : vector<1x512xf32> to vector<1x128xf32>
    %163 = arith.negf %162 : vector<1x128xf32>
    %164 = math.exp %163 : vector<1x128xf32>
    %cst_46 = arith.constant 1.000000e+00 : f32
    %165 = vector.broadcast %cst_46 : f32 to vector<1x128xf32>
    %166 = arith.addf %165, %164 : vector<1x128xf32>
    %167 = arith.divf %165, %166 : vector<1x128xf32>
    %168 = vector.extract_strided_slice %161 {offsets = [0, 128], sizes = [1, 128], strides = [1, 1]} : vector<1x512xf32> to vector<1x128xf32>
    %169 = arith.negf %168 : vector<1x128xf32>
    %170 = math.exp %169 : vector<1x128xf32>
    %cst_47 = arith.constant 1.000000e+00 : f32
    %171 = vector.broadcast %cst_47 : f32 to vector<1x128xf32>
    %172 = arith.addf %171, %170 : vector<1x128xf32>
    %173 = arith.divf %171, %172 : vector<1x128xf32>
    %174 = vector.extract_strided_slice %161 {offsets = [0, 256], sizes = [1, 128], strides = [1, 1]} : vector<1x512xf32> to vector<1x128xf32>
    %175 = math.tanh %174 : vector<1x128xf32>
    %176 = vector.extract_strided_slice %161 {offsets = [0, 384], sizes = [1, 128], strides = [1, 1]} : vector<1x512xf32> to vector<1x128xf32>
    %177 = arith.negf %176 : vector<1x128xf32>
    %178 = math.exp %177 : vector<1x128xf32>
    %cst_48 = arith.constant 1.000000e+00 : f32
    %179 = vector.broadcast %cst_48 : f32 to vector<1x128xf32>
    %180 = arith.addf %179, %178 : vector<1x128xf32>
    %181 = arith.divf %179, %180 : vector<1x128xf32>
    %182 = arith.mulf %173, %154 : vector<1x128xf32>
    %183 = arith.mulf %167, %175 : vector<1x128xf32>
    %184 = arith.addf %182, %183 : vector<1x128xf32>
    %185 = math.tanh %184 : vector<1x128xf32>
    %186 = arith.mulf %181, %185 : vector<1x128xf32>
    %c5 = arith.constant 5 : index
    %c0_49 = arith.constant 0 : index
    %187 = vector.load %arg10[%c5, %c0_49] : memref<8x128xf32, #tpu.memory_space<vmem>>, vector<1x128xf32>
    tpu.vector_store %arg10[%c5, %c0_49], %186 {strides = array<i32>} : memref<8x128xf32, #tpu.memory_space<vmem>>, vector<1x128xf32>,
    %188 = vector.extract_strided_slice %5 {offsets = [6, 0], sizes = [1, 512], strides = [1, 1]} : vector<8x512xf32> to vector<1x512xf32>
    %c0_50 = arith.constant 0 : index
    %c0_51 = arith.constant 0 : index
    %189 = vector.load %arg2[%c0_50, %c0_51] : memref<128x512xf32, #tpu.memory_space<vmem>>, vector<128x512xf32>
    %cst_52 = arith.constant dense<0.000000e+00> : vector<1x512xf32>
    %190 = tpu.matmul %186, %189, %cst_52 {dimension_numbers = #tpu.dot_dimension_numbers<[1], [0], [0], [1], [0, 0, 1, 1], [], []>} : vector<1x128xf32>, vector<128x512xf32>, vector<1x512xf32> -> vector<1x512xf32>
    %191 = arith.addf %188, %190 : vector<1x512xf32>
    %192 = vector.extract_strided_slice %191 {offsets = [0, 0], sizes = [1, 128], strides = [1, 1]} : vector<1x512xf32> to vector<1x128xf32>
    %193 = arith.negf %192 : vector<1x128xf32>
    %194 = math.exp %193 : vector<1x128xf32>
    %cst_53 = arith.constant 1.000000e+00 : f32
    %195 = vector.broadcast %cst_53 : f32 to vector<1x128xf32>
    %196 = arith.addf %195, %194 : vector<1x128xf32>
    %197 = arith.divf %195, %196 : vector<1x128xf32>
    %198 = vector.extract_strided_slice %191 {offsets = [0, 128], sizes = [1, 128], strides = [1, 1]} : vector<1x512xf32> to vector<1x128xf32>
    %199 = arith.negf %198 : vector<1x128xf32>
    %200 = math.exp %199 : vector<1x128xf32>
    %cst_54 = arith.constant 1.000000e+00 : f32
    %201 = vector.broadcast %cst_54 : f32 to vector<1x128xf32>
    %202 = arith.addf %201, %200 : vector<1x128xf32>
    %203 = arith.divf %201, %202 : vector<1x128xf32>
    %204 = vector.extract_strided_slice %191 {offsets = [0, 256], sizes = [1, 128], strides = [1, 1]} : vector<1x512xf32> to vector<1x128xf32>
    %205 = math.tanh %204 : vector<1x128xf32>
    %206 = vector.extract_strided_slice %191 {offsets = [0, 384], sizes = [1, 128], strides = [1, 1]} : vector<1x512xf32> to vector<1x128xf32>
    %207 = arith.negf %206 : vector<1x128xf32>
    %208 = math.exp %207 : vector<1x128xf32>
    %cst_55 = arith.constant 1.000000e+00 : f32
    %209 = vector.broadcast %cst_55 : f32 to vector<1x128xf32>
    %210 = arith.addf %209, %208 : vector<1x128xf32>
    %211 = arith.divf %209, %210 : vector<1x128xf32>
    %212 = arith.mulf %203, %184 : vector<1x128xf32>
    %213 = arith.mulf %197, %205 : vector<1x128xf32>
    %214 = arith.addf %212, %213 : vector<1x128xf32>
    %215 = math.tanh %214 : vector<1x128xf32>
    %216 = arith.mulf %211, %215 : vector<1x128xf32>
    %c6 = arith.constant 6 : index
    %c0_56 = arith.constant 0 : index
    %217 = vector.load %arg10[%c6, %c0_56] : memref<8x128xf32, #tpu.memory_space<vmem>>, vector<1x128xf32>
    tpu.vector_store %arg10[%c6, %c0_56], %216 {strides = array<i32>} : memref<8x128xf32, #tpu.memory_space<vmem>>, vector<1x128xf32>,
    %218 = vector.extract_strided_slice %5 {offsets = [7, 0], sizes = [1, 512], strides = [1, 1]} : vector<8x512xf32> to vector<1x512xf32>
    %c0_57 = arith.constant 0 : index
    %c0_58 = arith.constant 0 : index
    %219 = vector.load %arg2[%c0_57, %c0_58] : memref<128x512xf32, #tpu.memory_space<vmem>>, vector<128x512xf32>
    %cst_59 = arith.constant dense<0.000000e+00> : vector<1x512xf32>
    %220 = tpu.matmul %216, %219, %cst_59 {dimension_numbers = #tpu.dot_dimension_numbers<[1], [0], [0], [1], [0, 0, 1, 1], [], []>} : vector<1x128xf32>, vector<128x512xf32>, vector<1x512xf32> -> vector<1x512xf32>
    %221 = arith.addf %218, %220 : vector<1x512xf32>
    %222 = vector.extract_strided_slice %221 {offsets = [0, 0], sizes = [1, 128], strides = [1, 1]} : vector<1x512xf32> to vector<1x128xf32>
    %223 = arith.negf %222 : vector<1x128xf32>
    %224 = math.exp %223 : vector<1x128xf32>
    %cst_60 = arith.constant 1.000000e+00 : f32
    %225 = vector.broadcast %cst_60 : f32 to vector<1x128xf32>
    %226 = arith.addf %225, %224 : vector<1x128xf32>
    %227 = arith.divf %225, %226 : vector<1x128xf32>
    %228 = vector.extract_strided_slice %221 {offsets = [0, 128], sizes = [1, 128], strides = [1, 1]} : vector<1x512xf32> to vector<1x128xf32>
    %229 = arith.negf %228 : vector<1x128xf32>
    %230 = math.exp %229 : vector<1x128xf32>
    %cst_61 = arith.constant 1.000000e+00 : f32
    %231 = vector.broadcast %cst_61 : f32 to vector<1x128xf32>
    %232 = arith.addf %231, %230 : vector<1x128xf32>
    %233 = arith.divf %231, %232 : vector<1x128xf32>
    %234 = vector.extract_strided_slice %221 {offsets = [0, 256], sizes = [1, 128], strides = [1, 1]} : vector<1x512xf32> to vector<1x128xf32>
    %235 = math.tanh %234 : vector<1x128xf32>
    %236 = vector.extract_strided_slice %221 {offsets = [0, 384], sizes = [1, 128], strides = [1, 1]} : vector<1x512xf32> to vector<1x128xf32>
    %237 = arith.negf %236 : vector<1x128xf32>
    %238 = math.exp %237 : vector<1x128xf32>
    %cst_62 = arith.constant 1.000000e+00 : f32
    %239 = vector.broadcast %cst_62 : f32 to vector<1x128xf32>
    %240 = arith.addf %239, %238 : vector<1x128xf32>
    %241 = arith.divf %239, %240 : vector<1x128xf32>
    %242 = arith.mulf %233, %214 : vector<1x128xf32>
    %243 = arith.mulf %227, %235 : vector<1x128xf32>
    %244 = arith.addf %242, %243 : vector<1x128xf32>
    %245 = math.tanh %244 : vector<1x128xf32>
    %246 = arith.mulf %241, %245 : vector<1x128xf32>
    %c7 = arith.constant 7 : index
    %c0_63 = arith.constant 0 : index
    %247 = vector.load %arg10[%c7, %c0_63] : memref<8x128xf32, #tpu.memory_space<vmem>>, vector<1x128xf32>
    tpu.vector_store %arg10[%c7, %c0_63], %246 {strides = array<i32>} : memref<8x128xf32, #tpu.memory_space<vmem>>, vector<1x128xf32>,
    %c0_64 = arith.constant 0 : index
    %c0_65 = arith.constant 0 : index
    %248 = vector.load %arg10[%c0_64, %c0_65] : memref<8x128xf32, #tpu.memory_space<vmem>>, vector<8x128xf32>
    %c0_66 = arith.constant 0 : index
    %c0_67 = arith.constant 0 : index
    %249 = vector.load %arg4[%c0_66, %c0_67] : memref<128x2xf32, #tpu.memory_space<vmem>>, vector<128x2xf32>
    %cst_68 = arith.constant dense<0.000000e+00> : vector<8x2xf32>
    %250 = tpu.matmul %248, %249, %cst_68 {dimension_numbers = #tpu.dot_dimension_numbers<[1], [0], [0], [1], [0, 0, 1, 1], [], []>} : vector<8x128xf32>, vector<128x2xf32>, vector<8x2xf32> -> vector<8x2xf32>
    %c0_69 = arith.constant 0 : index
    %c0_70 = arith.constant 0 : index
    %251 = vector.load %arg5[%c0_69, %c0_70] : memref<1x2xf32, #tpu.memory_space<vmem>>, vector<1x2xf32>
    %252 = vector.broadcast %251 : vector<1x2xf32> to vector<8x2xf32>
    %253 = arith.addf %250, %252 : vector<8x2xf32>
    %c0_71 = arith.constant 0 : index
    %c0_72 = arith.constant 0 : index
    %254 = vector.load %arg8[%c0_71, %c0_72] : memref<8x2xf32, #tpu.memory_space<vmem>>, vector<8x2xf32>
    tpu.vector_store %arg8[%c0_71, %c0_72], %253 {strides = array<i32>} : memref<8x2xf32, #tpu.memory_space<vmem>>, vector<8x2xf32>,
    %c0_73 = arith.constant 0 : index
    %c0_74 = arith.constant 0 : index
    %255 = vector.load %arg6[%c0_73, %c0_74] : memref<128x1xf32, #tpu.memory_space<vmem>>, vector<128x1xf32>
    %cst_75 = arith.constant dense<0.000000e+00> : vector<8x1xf32>
    %256 = tpu.matmul %248, %255, %cst_75 {dimension_numbers = #tpu.dot_dimension_numbers<[1], [0], [0], [1], [0, 0, 1, 1], [], []>} : vector<8x128xf32>, vector<128x1xf32>, vector<8x1xf32> -> vector<8x1xf32>
    %c0_76 = arith.constant 0 : index
    %c0_77 = arith.constant 0 : index
    %257 = vector.load %arg7[%c0_76, %c0_77] : memref<1x1xf32, #tpu.memory_space<vmem>>, vector<1x1xf32>
    %258 = vector.broadcast %257 : vector<1x1xf32> to vector<8x1xf32>
    %259 = arith.addf %256, %258 : vector<8x1xf32>
    %c0_78 = arith.constant 0 : index
    %c0_79 = arith.constant 0 : index
    %260 = vector.load %arg9[%c0_78, %c0_79] : memref<8x1xf32, #tpu.memory_space<vmem>>, vector<8x1xf32>
    tpu.vector_store %arg9[%c0_78, %c0_79], %259 {strides = array<i32>} : memref<8x1xf32, #tpu.memory_space<vmem>>, vector<8x1xf32>,
    return
  }
}

</mosaic_0001>

<llo_original>
// kernel: tpu_custom_call.1
$region0: #{tpu_custom_call.1}
  #allocation0 [shape = 'u32[]', space=smem, size = 0x4, offset = 0x4, fixed_abs, tag = 'smem constant byte address 0x4 - core index']
  #allocation1 [shape = 'u32[144,128]{1,0:T(1,128)}', space=vmem, size = 0x12000, scoped, tag = 'internal scratch']
  #allocation2 [shape = 'f32[8,128]{1,0:T(8,128)}', space=vmem, size = 0x1000, scoped, tag = 'scratch operand']
  #allocation3 [shape = 'f32[1,1]{1,0:T(1,128)S(1)}', space=vmem, size = 0x200, scoped, tag = 'scoped memory for tpu_custom_call.1']
  %s0 = inlined_call_operand.vmem [shape: f32[8,3], index: 0, kind: input, shape index: {}]
  %s1 = inlined_call_operand.vmem [shape: f32[3,512], index: 1, kind: input, shape index: {}]
  %s2 = inlined_call_operand.hbm [shape: f32[128,512], index: 2, kind: input, shape index: {}]
  %s3 = inlined_call_operand.vmem [shape: f32[1,512], index: 3, kind: input, shape index: {}]
  %s4 = inlined_call_operand.vmem [shape: f32[128,2], index: 4, kind: input, shape index: {}]
  %s5 = inlined_call_operand.vmem [shape: f32[1,2], index: 5, kind: input, shape index: {}]
  %s6 = inlined_call_operand.vmem [shape: f32[128,1], index: 6, kind: input, shape index: {}]
  %s7 = inlined_call_operand.<no memory space> [shape: f32[1,1], index: 7, kind: input, shape index: {}]
  %s8 = inlined_call_operand.vmem [shape: f32[8,2], index: 8, kind: output, shape index: {0}]
  %s9 = inlined_call_operand.vmem [shape: f32[8,1], index: 9, kind: output, shape index: {1}]
  %10 = xla_tuple %s8, %s9
  %s11 = sld [smem:[#allocation0]]
  $region54: #{tpu_custom_call.1} parent=0
    _
  %s13 = ssub.s32 1, %s11
  %s14 = scalar_select 0, %s13, %s11
  %v15 = vstv %s7
  %16 = vst [vmem:[#allocation3] sm:$0x1] %v15
  $region1: #{tpu_custom_call.1} parent=0
    #allocation4 [shape = 'u8[262144]{0}', space=vmem, size = 0x40000, scoped, tag = 'input window, operand 2, single buffered']
    #allocation5 [shape = 's32[1]{0}', space=sflag, size = 0x4, scoped, tag = 'scoped memory for tpu_custom_call.1']
    %17 = vsyncpa [#allocation5], 0
    // Predicated region
    $region2: #{tpu_custom_call.1} parent=1 // pred_check
      _
    $region3: #{tpu_custom_call.1} parent=1 // pred_check_branch
      %19 = sbr.rel (0) target = $region5
    $region4: #{tpu_custom_call.1} parent=1 // pred_region
      _
    $region5: #{tpu_custom_call.1} parent=1 // pred_fallthru
      _
    // Predicated region
    $region6: #{tpu_custom_call.1} parent=1 // pred_check
      _
    $region7: #{tpu_custom_call.1} parent=1 // pred_check_branch
      %21 = sbr.rel (0) target = $region9
    $region8: #{tpu_custom_call.1} parent=1 // pred_region
      _
    $region9: #{tpu_custom_call.1} parent=1 // pred_fallthru
      _
    // Predicated region
    $region10: #{tpu_custom_call.1} parent=1 // pred_check
      _
    $region11: #{tpu_custom_call.1} parent=1 // pred_check_branch
      %23 = sbr.rel (0) target = $region13
    $region12: #{tpu_custom_call.1} parent=1 // pred_region
      %s25 = ssub.s32 8192, 8192
      %26 = vsyncadd [#allocation5], %s25
      %s27 = sshll.u32 [#allocation4], 4
      %s28 = int_to_ptr.vmem [resolvable:$true] %s27
      %33 = dma.hbm_to_vmem [thread:$0]  %s2, 8192, %s28, [#allocation5], 512, 512, 32
    $region13: #{tpu_custom_call.1} parent=1 // pred_fallthru
      _
    // Predicated region
    $region14: #{tpu_custom_call.1} parent=1 // pred_check
      _
    $region15: #{tpu_custom_call.1} parent=1 // pred_check_branch
      %35 = sbr.rel (0) target = $region17
    $region16: #{tpu_custom_call.1} parent=1 // pred_region
      _
    $region17: #{tpu_custom_call.1} parent=1 // pred_fallthru
      _
    // Predicated region
    $region18: #{tpu_custom_call.1} parent=1 // pred_check
      _
    $region19: #{tpu_custom_call.1} parent=1 // pred_check_branch
      %37 = sbr.rel (0) target = $region21
    $region20: #{tpu_custom_call.1} parent=1 // pred_region
      _
    $region21: #{tpu_custom_call.1} parent=1 // pred_fallthru
      _
    // Predicated region
    $region22: #{tpu_custom_call.1} parent=1 // pred_check
      _
    $region23: #{tpu_custom_call.1} parent=1 // pred_check_branch
      %39 = sbr.rel (0) target = $region25
    $region24: #{tpu_custom_call.1} parent=1 // pred_region
      _
    $region25: #{tpu_custom_call.1} parent=1 // pred_fallthru
      _
    // Predicated region
    $region26: #{tpu_custom_call.1} parent=1 // pred_check
      _
    $region27: #{tpu_custom_call.1} parent=1 // pred_check_branch
      %41 = sbr.rel (0) target = $region29
    $region28: #{tpu_custom_call.1} parent=1 // pred_region
      _
    $region29: #{tpu_custom_call.1} parent=1 // pred_fallthru
      _
    // Predicated region
    $region30: #{tpu_custom_call.1} parent=1 // pred_check
      _
    $region31: #{tpu_custom_call.1} parent=1 // pred_check_branch
      %43 = sbr.rel (0) target = $region33
    $region32: #{tpu_custom_call.1} parent=1 // pred_region
      _
    $region33: #{tpu_custom_call.1} parent=1 // pred_fallthru
      _
    // Predicated region
    $region34: #{tpu_custom_call.1} parent=1 // pred_check
      _
    $region35: #{tpu_custom_call.1} parent=1 // pred_check_branch
      %45 = sbr.rel (0) target = $region37
    $region36: #{tpu_custom_call.1} parent=1 // pred_region
      %46 = dma.done [#allocation5], 8192
    $region37: #{tpu_custom_call.1} parent=1 // pred_fallthru
      _
    %v47 = vld [vmem:[%s0] sm:$0xff]
    %v48 = vld [vmem:[%s1] sm:$0x77]
    %v49 = vld [vmem:[%s1 + $0x8] sm:$0x77]
    %v50 = vld [vmem:[%s3] sm:$0xf]
    %v52 = vlaneseq
    %v53 = vshrl.u32 %v52, 7
    %v54 = vsub.s32 0, %v53
    %v55 = vrot.slane %v50, %v54
    %v56 = vlaneseq
    %v57 = vshrl.u32 %v56, 7
    %v58 = vsub.s32 1, %v57
    %v59 = vrot.slane %v50, %v58
    %v60 = vlaneseq
    %v61 = vshrl.u32 %v60, 7
    %v62 = vsub.s32 2, %v61
    %v63 = vrot.slane %v50, %v62
    %v64 = vlaneseq
    %v65 = vshrl.u32 %v64, 7
    %v66 = vsub.s32 3, %v65
    %v67 = vrot.slane %v50, %v66
    %v74 = vcombine.high %v48, %v48
    %v75 = vcombine.high %v49, %v49
    %vm76 = vcmask 23552
    %v78 = vsel %vm76, %v47, 0
    %vm80 = vcmask 1042432
    %v81 = vsel %vm80, %v48, 0
    %v83 = vsel %vm80, %v74, 0
    %v85 = vsel %vm80, %v49, 0
    %v87 = vsel %vm80, %v75, 0
    %89 = vmatprep.subr.mxu0 %v83
    %90 = vmatpush1.msra.mxu0 %v81
    %91 = vmatprep.subr.mxu0 0.0
    %92 = vmatpush1.msra.mxu0 0.0
    %93 = vmatprep.subr.mxu0 0.0
    %94 = vmatpush1.msra.mxu0 0.0
    %95 = vmatprep.subr.mxu0 0.0
    %96 = vmatpush1.msra.mxu0 0.0
    %97 = vmatprep.subr.mxu0 0.0
    %98 = vmatpush1.msra.mxu0 0.0
    %99 = vmatprep.subr.mxu0 0.0
    %100 = vmatpush1.msra.mxu0 0.0
    %101 = vmatprep.subr.mxu0 0.0
    %102 = vmatpush1.msra.mxu0 0.0
    %103 = vmatprep.subr.mxu0 0.0
    %104 = vmatpush1.msra.mxu0 0.0
    %105 = vmatprep.subr.mxu0 0.0
    %106 = vmatpush1.msra.mxu0 0.0
    %107 = vmatprep.subr.mxu0 0.0
    %108 = vmatpush1.msra.mxu0 0.0
    %109 = vmatprep.subr.mxu0 0.0
    %110 = vmatpush1.msra.mxu0 0.0
    %111 = vmatprep.subr.mxu0 0.0
    %112 = vmatpush1.msra.mxu0 0.0
    %113 = vmatprep.subr.mxu0 0.0
    %114 = vmatpush1.msra.mxu0 0.0
    %115 = vmatprep.subr.mxu0 0.0
    %116 = vmatpush1.msra.mxu0 0.0
    %117 = vmatprep.subr.mxu0 0.0
    %118 = vmatpush1.msra.mxu0 0.0
    %119 = vmatprep.subr.mxu0 0.0
    %120 = vmatpush1.msra.mxu0 0.0
    %121 = vmatprep.subr.mxu0 0.0
    %122 = vmatpush1.msra.mxu0 0.0
    %123 = vmatprep.subr.mxu0 0.0
    %124 = vmatpush1.msra.mxu0 0.0
    %125 = vmatprep.subr.mxu0 0.0
    %126 = vmatpush1.msra.mxu0 0.0
    %127 = vmatprep.subr.mxu0 0.0
    %128 = vmatpush1.msra.mxu0 0.0
    %129 = vmatprep.subr.mxu0 0.0
    %130 = vmatpush1.msra.mxu0 0.0
    %131 = vmatprep.subr.mxu0 0.0
    %132 = vmatpush1.msra.mxu0 0.0
    %133 = vmatprep.subr.mxu0 0.0
    %134 = vmatpush1.msra.mxu0 0.0
    %135 = vmatprep.subr.mxu0 0.0
    %136 = vmatpush1.msra.mxu0 0.0
    %137 = vmatprep.subr.mxu0 0.0
    %138 = vmatpush1.msra.mxu0 0.0
    %139 = vmatprep.subr.mxu0 0.0
    %140 = vmatpush1.msra.mxu0 0.0
    %141 = vmatprep.subr.mxu0 0.0
    %142 = vmatpush1.msra.mxu0 0.0
    %143 = vmatprep.subr.mxu0 0.0
    %144 = vmatpush1.msra.mxu0 0.0
    %145 = vmatprep.subr.mxu0 0.0
    %146 = vmatpush1.msra.mxu0 0.0
    %147 = vmatprep.subr.mxu0 0.0
    %148 = vmatpush1.msra.mxu0 0.0
    %149 = vmatprep.subr.mxu0 0.0
    %150 = vmatpush1.msra.mxu0 0.0
    %151 = vmatprep.subr.mxu0 0.0
    %152 = vmatpush1.msra.mxu0 0.0
    %153 = vmatprep.mubr.f32.mxu0 0.0
    %154 = vmatmul.mubr.f32.gmra.mrb[0].mxu0 %v78
    %v155 = vpop.f32.mrb[0].mxu0
    %v156 = vadd.f32 %v55, %v155
    %v157 = vpop.f32.mrb[0].mxu0
    %v158 = vadd.f32 %v59, %v157
    %159 = vdwg.mxu0
    %160 = vmatprep.subr.mxu0 %v87
    %161 = vmatpush1.msra.mxu0 %v85
    %162 = vmatprep.subr.mxu0 0.0
    %163 = vmatpush1.msra.mxu0 0.0
    %164 = vmatprep.subr.mxu0 0.0
    %165 = vmatpush1.msra.mxu0 0.0
    %166 = vmatprep.subr.mxu0 0.0
    %167 = vmatpush1.msra.mxu0 0.0
    %168 = vmatprep.subr.mxu0 0.0
    %169 = vmatpush1.msra.mxu0 0.0
    %170 = vmatprep.subr.mxu0 0.0
    %171 = vmatpush1.msra.mxu0 0.0
    %172 = vmatprep.subr.mxu0 0.0
    %173 = vmatpush1.msra.mxu0 0.0
    %174 = vmatprep.subr.mxu0 0.0
    %175 = vmatpush1.msra.mxu0 0.0
    %176 = vmatprep.subr.mxu0 0.0
    %177 = vmatpush1.msra.mxu0 0.0
    %178 = vmatprep.subr.mxu0 0.0
    %179 = vmatpush1.msra.mxu0 0.0
    %180 = vmatprep.subr.mxu0 0.0
    %181 = vmatpush1.msra.mxu0 0.0
    %182 = vmatprep.subr.mxu0 0.0
    %183 = vmatpush1.msra.mxu0 0.0
    %184 = vmatprep.subr.mxu0 0.0
    %185 = vmatpush1.msra.mxu0 0.0
    %186 = vmatprep.subr.mxu0 0.0
    %187 = vmatpush1.msra.mxu0 0.0
    %188 = vmatprep.subr.mxu0 0.0
    %189 = vmatpush1.msra.mxu0 0.0
    %190 = vmatprep.subr.mxu0 0.0
    %191 = vmatpush1.msra.mxu0 0.0
    %192 = vmatprep.subr.mxu0 0.0
    %193 = vmatpush1.msra.mxu0 0.0
    %194 = vmatprep.subr.mxu0 0.0
    %195 = vmatpush1.msra.mxu0 0.0
    %196 = vmatprep.subr.mxu0 0.0
    %197 = vmatpush1.msra.mxu0 0.0
    %198 = vmatprep.subr.mxu0 0.0
    %199 = vmatpush1.msra.mxu0 0.0
    %200 = vmatprep.subr.mxu0 0.0
    %201 = vmatpush1.msra.mxu0 0.0
    %202 = vmatprep.subr.mxu0 0.0
    %203 = vmatpush1.msra.mxu0 0.0
    %204 = vmatprep.subr.mxu0 0.0
    %205 = vmatpush1.msra.mxu0 0.0
    %206 = vmatprep.subr.mxu0 0.0
    %207 = vmatpush1.msra.mxu0 0.0
    %208 = vmatprep.subr.mxu0 0.0
    %209 = vmatpush1.msra.mxu0 0.0
    %210 = vmatprep.subr.mxu0 0.0
    %211 = vmatpush1.msra.mxu0 0.0
    %212 = vmatprep.subr.mxu0 0.0
    %213 = vmatpush1.msra.mxu0 0.0
    %214 = vmatprep.subr.mxu0 0.0
    %215 = vmatpush1.msra.mxu0 0.0
    %216 = vmatprep.subr.mxu0 0.0
    %217 = vmatpush1.msra.mxu0 0.0
    %218 = vmatprep.subr.mxu0 0.0
    %219 = vmatpush1.msra.mxu0 0.0
    %220 = vmatprep.subr.mxu0 0.0
    %221 = vmatpush1.msra.mxu0 0.0
    %222 = vmatprep.subr.mxu0 0.0
    %223 = vmatpush1.msra.mxu0 0.0
    %224 = vmatprep.mubr.f32.mxu0 0.0
    %225 = vmatmul.mubr.f32.gmra.mrb[0].mxu0 %v78
    %v226 = vpop.f32.mrb[0].mxu0
    %v227 = vadd.f32 %v63, %v226
    %v228 = vpop.f32.mrb[0].mxu0
    %v229 = vadd.f32 %v67, %v228
    %230 = vdwg.mxu0
    %v231 = vld [vmem:[#allocation4] sm:$0xff]
    %v232 = vld [vmem:[#allocation4 + $0x8] sm:$0xff]
    %v233 = vld [vmem:[#allocation4 + $0x10] sm:$0xff]
    %v234 = vld [vmem:[#allocation4 + $0x18] sm:$0xff]
    %v235 = vld [vmem:[#allocation4 + $0x20] sm:$0xff]
    %v236 = vld [vmem:[#allocation4 + $0x28] sm:$0xff]
    %v237 = vld [vmem:[#allocation4 + $0x30] sm:$0xff]
    %v238 = vld [vmem:[#allocation4 + $0x38] sm:$0xff]
    %v239 = vld [vmem:[#allocation4 + $0x40] sm:$0xff]
    %v240 = vld [vmem:[#allocation4 + $0x48] sm:$0xff]
    %v241 = vld [vmem:[#allocation4 + $0x50] sm:$0xff]
    %v242 = vld [vmem:[#allocation4 + $0x58] sm:$0xff]
    %v243 = vld [vmem:[#allocation4 + $0x60] sm:$0xff]
    %v244 = vld [vmem:[#allocation4 + $0x68] sm:$0xff]
    %v245 = vld [vmem:[#allocation4 + $0x70] sm:$0xff]
    %v246 = vld [vmem:[#allocation4 + $0x78] sm:$0xff]
    %v247 = vld [vmem:[#allocation4 + $0x80] sm:$0xff]
    %v248 = vld [vmem:[#allocation4 + $0x88] sm:$0xff]
    %v249 = vld [vmem:[#allocation4 + $0x90] sm:$0xff]
    %v250 = vld [vmem:[#allocation4 + $0x98] sm:$0xff]
    %v251 = vld [vmem:[#allocation4 + $0xa0] sm:$0xff]
    %v252 = vld [vmem:[#allocation4 + $0xa8] sm:$0xff]
    %v253 = vld [vmem:[#allocation4 + $0xb0] sm:$0xff]
    %v254 = vld [vmem:[#allocation4 + $0xb8] sm:$0xff]
    %v255 = vld [vmem:[#allocation4 + $0xc0] sm:$0xff]
    %v256 = vld [vmem:[#allocation4 + $0xc8] sm:$0xff]
    %v257 = vld [vmem:[#allocation4 + $0xd0] sm:$0xff]
    %v258 = vld [vmem:[#allocation4 + $0xd8] sm:$0xff]
    %v259 = vld [vmem:[#allocation4 + $0xe0] sm:$0xff]
    %v260 = vld [vmem:[#allocation4 + $0xe8] sm:$0xff]
    %v261 = vld [vmem:[#allocation4 + $0xf0] sm:$0xff]
    %v262 = vld [vmem:[#allocation4 + $0xf8] sm:$0xff]
    %v263 = vld [vmem:[#allocation4 + $0x100] sm:$0xff]
    %v264 = vld [vmem:[#allocation4 + $0x108] sm:$0xff]
    %v265 = vld [vmem:[#allocation4 + $0x110] sm:$0xff]
    %v266 = vld [vmem:[#allocation4 + $0x118] sm:$0xff]
    %v267 = vld [vmem:[#allocation4 + $0x120] sm:$0xff]
    %v268 = vld [vmem:[#allocation4 + $0x128] sm:$0xff]
    %v269 = vld [vmem:[#allocation4 + $0x130] sm:$0xff]
    %v270 = vld [vmem:[#allocation4 + $0x138] sm:$0xff]
    %v271 = vld [vmem:[#allocation4 + $0x140] sm:$0xff]
    %v272 = vld [vmem:[#allocation4 + $0x148] sm:$0xff]
    %v273 = vld [vmem:[#allocation4 + $0x150] sm:$0xff]
    %v274 = vld [vmem:[#allocation4 + $0x158] sm:$0xff]
    %v275 = vld [vmem:[#allocation4 + $0x160] sm:$0xff]
    %v276 = vld [vmem:[#allocation4 + $0x168] sm:$0xff]
    %v277 = vld [vmem:[#allocation4 + $0x170] sm:$0xff]
    %v278 = vld [vmem:[#allocation4 + $0x178] sm:$0xff]
    %v279 = vld [vmem:[#allocation4 + $0x180] sm:$0xff]
    %v280 = vld [vmem:[#allocation4 + $0x188] sm:$0xff]
    %v281 = vld [vmem:[#allocation4 + $0x190] sm:$0xff]
    %v282 = vld [vmem:[#allocation4 + $0x198] sm:$0xff]
    %v283 = vld [vmem:[#allocation4 + $0x1a0] sm:$0xff]
    %v284 = vld [vmem:[#allocation4 + $0x1a8] sm:$0xff]
    %v285 = vld [vmem:[#allocation4 + $0x1b0] sm:$0xff]
    %v286 = vld [vmem:[#allocation4 + $0x1b8] sm:$0xff]
    %v287 = vld [vmem:[#allocation4 + $0x1c0] sm:$0xff]
    %v288 = vld [vmem:[#allocation4 + $0x1c8] sm:$0xff]
    %v289 = vld [vmem:[#allocation4 + $0x1d0] sm:$0xff]
    %v290 = vld [vmem:[#allocation4 + $0x1d8] sm:$0xff]
    %v291 = vld [vmem:[#allocation4 + $0x1e0] sm:$0xff]
    %v292 = vld [vmem:[#allocation4 + $0x1e8] sm:$0xff]
    %v293 = vld [vmem:[#allocation4 + $0x1f0] sm:$0xff]
    %v294 = vld [vmem:[#allocation4 + $0x1f8] sm:$0xff]
    %295 = vmatprep.subr.mxu0 %v232
    %296 = vmatpush1.msra.mxu0 %v231
    %297 = vmatprep.subr.mxu0 %v236
    %298 = vmatpush1.msra.mxu0 %v235
    %299 = vmatprep.subr.mxu0 %v240
    %300 = vmatpush1.msra.mxu0 %v239
    %301 = vmatprep.subr.mxu0 %v244
    %302 = vmatpush1.msra.mxu0 %v243
    %303 = vmatprep.subr.mxu0 %v248
    %304 = vmatpush1.msra.mxu0 %v247
    %305 = vmatprep.subr.mxu0 %v252
    %306 = vmatpush1.msra.mxu0 %v251
    %307 = vmatprep.subr.mxu0 %v256
    %308 = vmatpush1.msra.mxu0 %v255
    %309 = vmatprep.subr.mxu0 %v260
    %310 = vmatpush1.msra.mxu0 %v259
    %311 = vmatprep.subr.mxu0 %v264
    %312 = vmatpush1.msra.mxu0 %v263
    %313 = vmatprep.subr.mxu0 %v268
    %314 = vmatpush1.msra.mxu0 %v267
    %315 = vmatprep.subr.mxu0 %v272
    %316 = vmatpush1.msra.mxu0 %v271
    %317 = vmatprep.subr.mxu0 %v276
    %318 = vmatpush1.msra.mxu0 %v275
    %319 = vmatprep.subr.mxu0 %v280
    %320 = vmatpush1.msra.mxu0 %v279
    %321 = vmatprep.subr.mxu0 %v284
    %322 = vmatpush1.msra.mxu0 %v283
    %323 = vmatprep.subr.mxu0 %v288
    %324 = vmatpush1.msra.mxu0 %v287
    %325 = vmatprep.subr.mxu0 %v292
    %326 = vmatpush1.msra.mxu0 %v291
    %327 = vmatprep.subr.mxu0 0.0
    %328 = vmatpush1.msra.mxu0 0.0
    %329 = vmatprep.subr.mxu0 0.0
    %330 = vmatpush1.msra.mxu0 0.0
    %331 = vmatprep.subr.mxu0 0.0
    %332 = vmatpush1.msra.mxu0 0.0
    %333 = vmatprep.subr.mxu0 0.0
    %334 = vmatpush1.msra.mxu0 0.0
    %335 = vmatprep.subr.mxu0 0.0
    %336 = vmatpush1.msra.mxu0 0.0
    %337 = vmatprep.subr.mxu0 0.0
    %338 = vmatpush1.msra.mxu0 0.0
    %339 = vmatprep.subr.mxu0 0.0
    %340 = vmatpush1.msra.mxu0 0.0
    %341 = vmatprep.subr.mxu0 0.0
    %342 = vmatpush1.msra.mxu0 0.0
    %343 = vmatprep.subr.mxu0 0.0
    %344 = vmatpush1.msra.mxu0 0.0
    %345 = vmatprep.subr.mxu0 0.0
    %346 = vmatpush1.msra.mxu0 0.0
    %347 = vmatprep.subr.mxu0 0.0
    %348 = vmatpush1.msra.mxu0 0.0
    %349 = vmatprep.subr.mxu0 0.0
    %350 = vmatpush1.msra.mxu0 0.0
    %351 = vmatprep.subr.mxu0 0.0
    %352 = vmatpush1.msra.mxu0 0.0
    %353 = vmatprep.subr.mxu0 0.0
    %354 = vmatpush1.msra.mxu0 0.0
    %355 = vmatprep.subr.mxu0 0.0
    %356 = vmatpush1.msra.mxu0 0.0
    %357 = vmatprep.subr.mxu0 0.0
    %358 = vmatpush1.msra.mxu0 0.0
    %359 = vmatprep.mubr.f32.mxu0 0.0
    %360 = vmatmul.mubr.f32.gmra.mrb[0].mxu0 0.0
    %v361 = vpop.f32.mrb[0].mxu0
    %v362 = vadd.f32 0.0, %v361
    %v363 = vpop.f32.mrb[0].mxu0
    %v364 = vadd.f32 0.0, %v363
    %365 = vdwg.mxu0
    %366 = vmatprep.subr.mxu0 %v234
    %367 = vmatpush1.msra.mxu0 %v233
    %368 = vmatprep.subr.mxu0 %v238
    %369 = vmatpush1.msra.mxu0 %v237
    %370 = vmatprep.subr.mxu0 %v242
    %371 = vmatpush1.msra.mxu0 %v241
    %372 = vmatprep.subr.mxu0 %v246
    %373 = vmatpush1.msra.mxu0 %v245
    %374 = vmatprep.subr.mxu0 %v250
    %375 = vmatpush1.msra.mxu0 %v249
    %376 = vmatprep.subr.mxu0 %v254
    %377 = vmatpush1.msra.mxu0 %v253
    %378 = vmatprep.subr.mxu0 %v258
    %379 = vmatpush1.msra.mxu0 %v257
    %380 = vmatprep.subr.mxu0 %v262
    %381 = vmatpush1.msra.mxu0 %v261
    %382 = vmatprep.subr.mxu0 %v266
    %383 = vmatpush1.msra.mxu0 %v265
    %384 = vmatprep.subr.mxu0 %v270
    %385 = vmatpush1.msra.mxu0 %v269
    %386 = vmatprep.subr.mxu0 %v274
    %387 = vmatpush1.msra.mxu0 %v273
    %388 = vmatprep.subr.mxu0 %v278
    %389 = vmatpush1.msra.mxu0 %v277
    %390 = vmatprep.subr.mxu0 %v282
    %391 = vmatpush1.msra.mxu0 %v281
    %392 = vmatprep.subr.mxu0 %v286
    %393 = vmatpush1.msra.mxu0 %v285
    %394 = vmatprep.subr.mxu0 %v290
    %395 = vmatpush1.msra.mxu0 %v289
    %396 = vmatprep.subr.mxu0 %v294
    %397 = vmatpush1.msra.mxu0 %v293
    %398 = vmatprep.subr.mxu0 0.0
    %399 = vmatpush1.msra.mxu0 0.0
    %400 = vmatprep.subr.mxu0 0.0
    %401 = vmatpush1.msra.mxu0 0.0
    %402 = vmatprep.subr.mxu0 0.0
    %403 = vmatpush1.msra.mxu0 0.0
    %404 = vmatprep.subr.mxu0 0.0
    %405 = vmatpush1.msra.mxu0 0.0
    %406 = vmatprep.subr.mxu0 0.0
    %407 = vmatpush1.msra.mxu0 0.0
    %408 = vmatprep.subr.mxu0 0.0
    %409 = vmatpush1.msra.mxu0 0.0
    %410 = vmatprep.subr.mxu0 0.0
    %411 = vmatpush1.msra.mxu0 0.0
    %412 = vmatprep.subr.mxu0 0.0
    %413 = vmatpush1.msra.mxu0 0.0
    %414 = vmatprep.subr.mxu0 0.0
    %415 = vmatpush1.msra.mxu0 0.0
    %416 = vmatprep.subr.mxu0 0.0
    %417 = vmatpush1.msra.mxu0 0.0
    %418 = vmatprep.subr.mxu0 0.0
    %419 = vmatpush1.msra.mxu0 0.0
    %420 = vmatprep.subr.mxu0 0.0
    %421 = vmatpush1.msra.mxu0 0.0
    %422 = vmatprep.subr.mxu0 0.0
    %423 = vmatpush1.msra.mxu0 0.0
    %424 = vmatprep.subr.mxu0 0.0
    %425 = vmatpush1.msra.mxu0 0.0
    %426 = vmatprep.subr.mxu0 0.0
    %427 = vmatpush1.msra.mxu0 0.0
    %428 = vmatprep.subr.mxu0 0.0
    %429 = vmatpush1.msra.mxu0 0.0
    %430 = vmatprep.mubr.f32.mxu0 0.0
    %431 = vmatmul.mubr.f32.gmra.mrb[0].mxu0 0.0
    %v432 = vpop.f32.mrb[0].mxu0
    %v433 = vadd.f32 0.0, %v432
    %v434 = vpop.f32.mrb[0].mxu0
    %v435 = vadd.f32 0.0, %v434
    %436 = vdwg.mxu0
    %v437 = vadd.f32 %v156, %v362
    %v438 = vadd.f32 %v158, %v364
    %v439 = vadd.f32 %v227, %v433
    %v440 = vadd.f32 %v229, %v435
    %v441 = vxor.u32 %v437, 2147483648
    %v442 = vmul.f32 %v441, 1.442695
    %v443 = vpow.pop %v442
    %v444 = vadd.f32 %v443, 1.0
    %v445 = vrcp.pop %v444
    %v446 = vmul.f32 1.0, %v445
    %v447 = vxor.u32 %v438, 2147483648
    %v448 = vmul.f32 %v447, 1.442695
    %v449 = vpow.pop %v448
    %v450 = vadd.f32 %v449, 1.0
    %v451 = vrcp.pop %v450
    %v452 = vmul.f32 1.0, %v451
    %v453 = vtanh.pop %v439
    %v454 = vxor.u32 %v440, 2147483648
    %v455 = vmul.f32 %v454, 1.442695
    %v456 = vpow.pop %v455
    %v457 = vadd.f32 %v456, 1.0
    %v458 = vrcp.pop %v457
    %v459 = vmul.f32 1.0, %v458
    %v460 = vmul.f32 %v452, 0.0
    %v461 = vmul.f32 %v446, %v453
    %v462 = vadd.f32 %v460, %v461
    %v463 = vtanh.pop %v462
    %v464 = vmul.f32 %v459, %v463
    %465 = vst [vmem:[#allocation2] sm:$0x1] %v464
    %v466 = vld [vmem:[#allocation4] sm:$0xff]
    %v467 = vld [vmem:[#allocation4 + $0x8] sm:$0xff]
    %v468 = vld [vmem:[#allocation4 + $0x10] sm:$0xff]
    %v469 = vld [vmem:[#allocation4 + $0x18] sm:$0xff]
    %v470 = vld [vmem:[#allocation4 + $0x20] sm:$0xff]
    %v471 = vld [vmem:[#allocation4 + $0x28] sm:$0xff]
    %v472 = vld [vmem:[#allocation4 + $0x30] sm:$0xff]
    %v473 = vld [vmem:[#allocation4 + $0x38] sm:$0xff]
    %v474 = vld [vmem:[#allocation4 + $0x40] sm:$0xff]
    %v475 = vld [vmem:[#allocation4 + $0x48] sm:$0xff]
    %v476 = vld [vmem:[#allocation4 + $0x50] sm:$0xff]
    %v477 = vld [vmem:[#allocation4 + $0x58] sm:$0xff]
    %v478 = vld [vmem:[#allocation4 + $0x60] sm:$0xff]
    %v479 = vld [vmem:[#allocation4 + $0x68] sm:$0xff]
    %v480 = vld [vmem:[#allocation4 + $0x70] sm:$0xff]
    %v481 = vld [vmem:[#allocation4 + $0x78] sm:$0xff]
    %v482 = vld [vmem:[#allocation4 + $0x80] sm:$0xff]
    %v483 = vld [vmem:[#allocation4 + $0x88] sm:$0xff]
    %v484 = vld [vmem:[#allocation4 + $0x90] sm:$0xff]
    %v485 = vld [vmem:[#allocation4 + $0x98] sm:$0xff]
    %v486 = vld [vmem:[#allocation4 + $0xa0] sm:$0xff]
    %v487 = vld [vmem:[#allocation4 + $0xa8] sm:$0xff]
    %v488 = vld [vmem:[#allocation4 + $0xb0] sm:$0xff]
    %v489 = vld [vmem:[#allocation4 + $0xb8] sm:$0xff]
    %v490 = vld [vmem:[#allocation4 + $0xc0] sm:$0xff]
    %v491 = vld [vmem:[#allocation4 + $0xc8] sm:$0xff]
    %v492 = vld [vmem:[#allocation4 + $0xd0] sm:$0xff]
    %v493 = vld [vmem:[#allocation4 + $0xd8] sm:$0xff]
    %v494 = vld [vmem:[#allocation4 + $0xe0] sm:$0xff]
    %v495 = vld [vmem:[#allocation4 + $0xe8] sm:$0xff]
    %v496 = vld [vmem:[#allocation4 + $0xf0] sm:$0xff]
    %v497 = vld [vmem:[#allocation4 + $0xf8] sm:$0xff]
    %v498 = vld [vmem:[#allocation4 + $0x100] sm:$0xff]
    %v499 = vld [vmem:[#allocation4 + $0x108] sm:$0xff]
    %v500 = vld [vmem:[#allocation4 + $0x110] sm:$0xff]
    %v501 = vld [vmem:[#allocation4 + $0x118] sm:$0xff]
    %v502 = vld [vmem:[#allocation4 + $0x120] sm:$0xff]
    %v503 = vld [vmem:[#allocation4 + $0x128] sm:$0xff]
    %v504 = vld [vmem:[#allocation4 + $0x130] sm:$0xff]
    %v505 = vld [vmem:[#allocation4 + $0x138] sm:$0xff]
    %v506 = vld [vmem:[#allocation4 + $0x140] sm:$0xff]
    %v507 = vld [vmem:[#allocation4 + $0x148] sm:$0xff]
    %v508 = vld [vmem:[#allocation4 + $0x150] sm:$0xff]
    %v509 = vld [vmem:[#allocation4 + $0x158] sm:$0xff]
    %v510 = vld [vmem:[#allocation4 + $0x160] sm:$0xff]
    %v511 = vld [vmem:[#allocation4 + $0x168] sm:$0xff]
    %v512 = vld [vmem:[#allocation4 + $0x170] sm:$0xff]
    %v513 = vld [vmem:[#allocation4 + $0x178] sm:$0xff]
    %v514 = vld [vmem:[#allocation4 + $0x180] sm:$0xff]
    %v515 = vld [vmem:[#allocation4 + $0x188] sm:$0xff]
    %v516 = vld [vmem:[#allocation4 + $0x190] sm:$0xff]
    %v517 = vld [vmem:[#allocation4 + $0x198] sm:$0xff]
    %v518 = vld [vmem:[#allocation4 + $0x1a0] sm:$0xff]
    %v519 = vld [vmem:[#allocation4 + $0x1a8] sm:$0xff]
    %v520 = vld [vmem:[#allocation4 + $0x1b0] sm:$0xff]
    %v521 = vld [vmem:[#allocation4 + $0x1b8] sm:$0xff]
    %v522 = vld [vmem:[#allocation4 + $0x1c0] sm:$0xff]
    %v523 = vld [vmem:[#allocation4 + $0x1c8] sm:$0xff]
    %v524 = vld [vmem:[#allocation4 + $0x1d0] sm:$0xff]
    %v525 = vld [vmem:[#allocation4 + $0x1d8] sm:$0xff]
    %v526 = vld [vmem:[#allocation4 + $0x1e0] sm:$0xff]
    %v527 = vld [vmem:[#allocation4 + $0x1e8] sm:$0xff]
    %v528 = vld [vmem:[#allocation4 + $0x1f0] sm:$0xff]
    %v529 = vld [vmem:[#allocation4 + $0x1f8] sm:$0xff]
    %530 = vmatprep.subr.mxu0 %v467
    %531 = vmatpush1.msra.mxu0 %v466
    %532 = vmatprep.subr.mxu0 %v471
    %533 = vmatpush1.msra.mxu0 %v470
    %534 = vmatprep.subr.mxu0 %v475
    %535 = vmatpush1.msra.mxu0 %v474
    %536 = vmatprep.subr.mxu0 %v479
    %537 = vmatpush1.msra.mxu0 %v478
    %538 = vmatprep.subr.mxu0 %v483
    %539 = vmatpush1.msra.mxu0 %v482
    %540 = vmatprep.subr.mxu0 %v487
    %541 = vmatpush1.msra.mxu0 %v486
    %542 = vmatprep.subr.mxu0 %v491
    %543 = vmatpush1.msra.mxu0 %v490
    %544 = vmatprep.subr.mxu0 %v495
    %545 = vmatpush1.msra.mxu0 %v494
    %546 = vmatprep.subr.mxu0 %v499
    %547 = vmatpush1.msra.mxu0 %v498
    %548 = vmatprep.subr.mxu0 %v503
    %549 = vmatpush1.msra.mxu0 %v502
    %550 = vmatprep.subr.mxu0 %v507
    %551 = vmatpush1.msra.mxu0 %v506
    %552 = vmatprep.subr.mxu0 %v511
    %553 = vmatpush1.msra.mxu0 %v510
    %554 = vmatprep.subr.mxu0 %v515
    %555 = vmatpush1.msra.mxu0 %v514
    %556 = vmatprep.subr.mxu0 %v519
    %557 = vmatpush1.msra.mxu0 %v518
    %558 = vmatprep.subr.mxu0 %v523
    %559 = vmatpush1.msra.mxu0 %v522
    %560 = vmatprep.subr.mxu0 %v527
    %561 = vmatpush1.msra.mxu0 %v526
    %562 = vmatprep.subr.mxu0 0.0
    %563 = vmatpush1.msra.mxu0 0.0
    %564 = vmatprep.subr.mxu0 0.0
    %565 = vmatpush1.msra.mxu0 0.0
    %566 = vmatprep.subr.mxu0 0.0
    %567 = vmatpush1.msra.mxu0 0.0
    %568 = vmatprep.subr.mxu0 0.0
    %569 = vmatpush1.msra.mxu0 0.0
    %570 = vmatprep.subr.mxu0 0.0
    %571 = vmatpush1.msra.mxu0 0.0
    %572 = vmatprep.subr.mxu0 0.0
    %573 = vmatpush1.msra.mxu0 0.0
    %574 = vmatprep.subr.mxu0 0.0
    %575 = vmatpush1.msra.mxu0 0.0
    %576 = vmatprep.subr.mxu0 0.0
    %577 = vmatpush1.msra.mxu0 0.0
    %578 = vmatprep.subr.mxu0 0.0
    %579 = vmatpush1.msra.mxu0 0.0
    %580 = vmatprep.subr.mxu0 0.0
    %581 = vmatpush1.msra.mxu0 0.0
    %582 = vmatprep.subr.mxu0 0.0
    %583 = vmatpush1.msra.mxu0 0.0
    %584 = vmatprep.subr.mxu0 0.0
    %585 = vmatpush1.msra.mxu0 0.0
    %586 = vmatprep.subr.mxu0 0.0
    %587 = vmatpush1.msra.mxu0 0.0
    %588 = vmatprep.subr.mxu0 0.0
    %589 = vmatpush1.msra.mxu0 0.0
    %590 = vmatprep.subr.mxu0 0.0
    %591 = vmatpush1.msra.mxu0 0.0
    %592 = vmatprep.subr.mxu0 0.0
    %593 = vmatpush1.msra.mxu0 0.0
    %594 = vmatprep.mubr.f32.mxu0 0.0
    %595 = vmatmul.mubr.f32.gmra.mrb[0].mxu0 %v464
    %v596 = vpop.f32.mrb[0].mxu0
    %v597 = vadd.f32 0.0, %v596
    %v598 = vpop.f32.mrb[0].mxu0
    %v599 = vadd.f32 0.0, %v598
    %600 = vdwg.mxu0
    %601 = vmatprep.subr.mxu0 %v469
    %602 = vmatpush1.msra.mxu0 %v468
    %603 = vmatprep.subr.mxu0 %v473
    %604 = vmatpush1.msra.mxu0 %v472
    %605 = vmatprep.subr.mxu0 %v477
    %606 = vmatpush1.msra.mxu0 %v476
    %607 = vmatprep.subr.mxu0 %v481
    %608 = vmatpush1.msra.mxu0 %v480
    %609 = vmatprep.subr.mxu0 %v485
    %610 = vmatpush1.msra.mxu0 %v484
    %611 = vmatprep.subr.mxu0 %v489
    %612 = vmatpush1.msra.mxu0 %v488
    %613 = vmatprep.subr.mxu0 %v493
    %614 = vmatpush1.msra.mxu0 %v492
    %615 = vmatprep.subr.mxu0 %v497
    %616 = vmatpush1.msra.mxu0 %v496
    %617 = vmatprep.subr.mxu0 %v501
    %618 = vmatpush1.msra.mxu0 %v500
    %619 = vmatprep.subr.mxu0 %v505
    %620 = vmatpush1.msra.mxu0 %v504
    %621 = vmatprep.subr.mxu0 %v509
    %622 = vmatpush1.msra.mxu0 %v508
    %623 = vmatprep.subr.mxu0 %v513
    %624 = vmatpush1.msra.mxu0 %v512
    %625 = vmatprep.subr.mxu0 %v517
    %626 = vmatpush1.msra.mxu0 %v516
    %627 = vmatprep.subr.mxu0 %v521
    %628 = vmatpush1.msra.mxu0 %v520
    %629 = vmatprep.subr.mxu0 %v525
    %630 = vmatpush1.msra.mxu0 %v524
    %631 = vmatprep.subr.mxu0 %v529
    %632 = vmatpush1.msra.mxu0 %v528
    %633 = vmatprep.subr.mxu0 0.0
    %634 = vmatpush1.msra.mxu0 0.0
    %635 = vmatprep.subr.mxu0 0.0
    %636 = vmatpush1.msra.mxu0 0.0
    %637 = vmatprep.subr.mxu0 0.0
    %638 = vmatpush1.msra.mxu0 0.0
    %639 = vmatprep.subr.mxu0 0.0
    %640 = vmatpush1.msra.mxu0 0.0
    %641 = vmatprep.subr.mxu0 0.0
    %642 = vmatpush1.msra.mxu0 0.0
    %643 = vmatprep.subr.mxu0 0.0
    %644 = vmatpush1.msra.mxu0 0.0
    %645 = vmatprep.subr.mxu0 0.0
    %646 = vmatpush1.msra.mxu0 0.0
    %647 = vmatprep.subr.mxu0 0.0
    %648 = vmatpush1.msra.mxu0 0.0
    %649 = vmatprep.subr.mxu0 0.0
    %650 = vmatpush1.msra.mxu0 0.0
    %651 = vmatprep.subr.mxu0 0.0
    %652 = vmatpush1.msra.mxu0 0.0
    %653 = vmatprep.subr.mxu0 0.0
    %654 = vmatpush1.msra.mxu0 0.0
    %655 = vmatprep.subr.mxu0 0.0
    %656 = vmatpush1.msra.mxu0 0.0
    %657 = vmatprep.subr.mxu0 0.0
    %658 = vmatpush1.msra.mxu0 0.0
    %659 = vmatprep.subr.mxu0 0.0
    %660 = vmatpush1.msra.mxu0 0.0
    %661 = vmatprep.subr.mxu0 0.0
    %662 = vmatpush1.msra.mxu0 0.0
    %663 = vmatprep.subr.mxu0 0.0
    %664 = vmatpush1.msra.mxu0 0.0
    %665 = vmatprep.mubr.f32.mxu0 0.0
    %666 = vmatmul.mubr.f32.gmra.mrb[0].mxu0 %v464
    %v667 = vpop.f32.mrb[0].mxu0
    %v668 = vadd.f32 0.0, %v667
    %v669 = vpop.f32.mrb[0].mxu0
    %v670 = vadd.f32 0.0, %v669
    %671 = vdwg.mxu0
    %v676 = vrot.slane %v597, 7
    %v677 = vrot.slane %v599, 7
    %v678 = vrot.slane %v668, 7
    %v679 = vrot.slane %v670, 7
    %v684 = vadd.f32 %v156, %v676
    %v685 = vadd.f32 %v158, %v677
    %v686 = vadd.f32 %v227, %v678
    %v687 = vadd.f32 %v229, %v679
    %v688 = vxor.u32 %v684, 2147483648
    %v689 = vmul.f32 %v688, 1.442695
    %v690 = vpow.pop %v689
    %v691 = vadd.f32 %v690, 1.0
    %v692 = vrcp.pop %v691
    %v693 = vmul.f32 1.0, %v692
    %v694 = vxor.u32 %v685, 2147483648
    %v695 = vmul.f32 %v694, 1.442695
    %v696 = vpow.pop %v695
    %v697 = vadd.f32 %v696, 1.0
    %v698 = vrcp.pop %v697
    %v699 = vmul.f32 1.0, %v698
    %v700 = vtanh.pop %v686
    %v701 = vxor.u32 %v687, 2147483648
    %v702 = vmul.f32 %v701, 1.442695
    %v703 = vpow.pop %v702
    %v704 = vadd.f32 %v703, 1.0
    %v705 = vrcp.pop %v704
    %v706 = vmul.f32 1.0, %v705
    %v708 = vrot.slane %v462, 7
    %v710 = vmul.f32 %v699, %v708
    %v711 = vmul.f32 %v693, %v700
    %v712 = vadd.f32 %v710, %v711
    %v713 = vtanh.pop %v712
    %v714 = vmul.f32 %v706, %v713
    %715 = vst [vmem:[#allocation2] sm:$0x2] %v714
    %v716 = vld [vmem:[#allocation4] sm:$0xff]
    %v717 = vld [vmem:[#allocation4 + $0x8] sm:$0xff]
    %v718 = vld [vmem:[#allocation4 + $0x10] sm:$0xff]
    %v719 = vld [vmem:[#allocation4 + $0x18] sm:$0xff]
    %v720 = vld [vmem:[#allocation4 + $0x20] sm:$0xff]
    %v721 = vld [vmem:[#allocation4 + $0x28] sm:$0xff]
    %v722 = vld [vmem:[#allocation4 + $0x30] sm:$0xff]
    %v723 = vld [vmem:[#allocation4 + $0x38] sm:$0xff]
    %v724 = vld [vmem:[#allocation4 + $0x40] sm:$0xff]
    %v725 = vld [vmem:[#allocation4 + $0x48] sm:$0xff]
    %v726 = vld [vmem:[#allocation4 + $0x50] sm:$0xff]
    %v727 = vld [vmem:[#allocation4 + $0x58] sm:$0xff]
    %v728 = vld [vmem:[#allocation4 + $0x60] sm:$0xff]
    %v729 = vld [vmem:[#allocation4 + $0x68] sm:$0xff]
    %v730 = vld [vmem:[#allocation4 + $0x70] sm:$0xff]
    %v731 = vld [vmem:[#allocation4 + $0x78] sm:$0xff]
    %v732 = vld [vmem:[#allocation4 + $0x80] sm:$0xff]
    %v733 = vld [vmem:[#allocation4 + $0x88] sm:$0xff]
    %v734 = vld [vmem:[#allocation4 + $0x90] sm:$0xff]
    %v735 = vld [vmem:[#allocation4 + $0x98] sm:$0xff]
    %v736 = vld [vmem:[#allocation4 + $0xa0] sm:$0xff]
    %v737 = vld [vmem:[#allocation4 + $0xa8] sm:$0xff]
    %v738 = vld [vmem:[#allocation4 + $0xb0] sm:$0xff]
    %v739 = vld [vmem:[#allocation4 + $0xb8] sm:$0xff]
    %v740 = vld [vmem:[#allocation4 + $0xc0] sm:$0xff]
    %v741 = vld [vmem:[#allocation4 + $0xc8] sm:$0xff]
    %v742 = vld [vmem:[#allocation4 + $0xd0] sm:$0xff]
    %v743 = vld [vmem:[#allocation4 + $0xd8] sm:$0xff]
    %v744 = vld [vmem:[#allocation4 + $0xe0] sm:$0xff]
    %v745 = vld [vmem:[#allocation4 + $0xe8] sm:$0xff]
    %v746 = vld [vmem:[#allocation4 + $0xf0] sm:$0xff]
    %v747 = vld [vmem:[#allocation4 + $0xf8] sm:$0xff]
    %v748 = vld [vmem:[#allocation4 + $0x100] sm:$0xff]
    %v749 = vld [vmem:[#allocation4 + $0x108] sm:$0xff]
    %v750 = vld [vmem:[#allocation4 + $0x110] sm:$0xff]
    %v751 = vld [vmem:[#allocation4 + $0x118] sm:$0xff]
    %v752 = vld [vmem:[#allocation4 + $0x120] sm:$0xff]
    %v753 = vld [vmem:[#allocation4 + $0x128] sm:$0xff]
    %v754 = vld [vmem:[#allocation4 + $0x130] sm:$0xff]
    %v755 = vld [vmem:[#allocation4 + $0x138] sm:$0xff]
    %v756 = vld [vmem:[#allocation4 + $0x140] sm:$0xff]
    %v757 = vld [vmem:[#allocation4 + $0x148] sm:$0xff]
    %v758 = vld [vmem:[#allocation4 + $0x150] sm:$0xff]
    %v759 = vld [vmem:[#allocation4 + $0x158] sm:$0xff]
    %v760 = vld [vmem:[#allocation4 + $0x160] sm:$0xff]
    %v761 = vld [vmem:[#allocation4 + $0x168] sm:$0xff]
    %v762 = vld [vmem:[#allocation4 + $0x170] sm:$0xff]
    %v763 = vld [vmem:[#allocation4 + $0x178] sm:$0xff]
    %v764 = vld [vmem:[#allocation4 + $0x180] sm:$0xff]
    %v765 = vld [vmem:[#allocation4 + $0x188] sm:$0xff]
    %v766 = vld [vmem:[#allocation4 + $0x190] sm:$0xff]
    %v767 = vld [vmem:[#allocation4 + $0x198] sm:$0xff]
    %v768 = vld [vmem:[#allocation4 + $0x1a0] sm:$0xff]
    %v769 = vld [vmem:[#allocation4 + $0x1a8] sm:$0xff]
    %v770 = vld [vmem:[#allocation4 + $0x1b0] sm:$0xff]
    %v771 = vld [vmem:[#allocation4 + $0x1b8] sm:$0xff]
    %v772 = vld [vmem:[#allocation4 + $0x1c0] sm:$0xff]
    %v773 = vld [vmem:[#allocation4 + $0x1c8] sm:$0xff]
    %v774 = vld [vmem:[#allocation4 + $0x1d0] sm:$0xff]
    %v775 = vld [vmem:[#allocation4 + $0x1d8] sm:$0xff]
    %v776 = vld [vmem:[#allocation4 + $0x1e0] sm:$0xff]
    %v777 = vld [vmem:[#allocation4 + $0x1e8] sm:$0xff]
    %v778 = vld [vmem:[#allocation4 + $0x1f0] sm:$0xff]
    %v779 = vld [vmem:[#allocation4 + $0x1f8] sm:$0xff]
    %v781 = vrot.slane %v714, 1
    %783 = vmatprep.subr.mxu0 %v717
    %784 = vmatpush1.msra.mxu0 %v716
    %785 = vmatprep.subr.mxu0 %v721
    %786 = vmatpush1.msra.mxu0 %v720
    %787 = vmatprep.subr.mxu0 %v725
    %788 = vmatpush1.msra.mxu0 %v724
    %789 = vmatprep.subr.mxu0 %v729
    %790 = vmatpush1.msra.mxu0 %v728
    %791 = vmatprep.subr.mxu0 %v733
    %792 = vmatpush1.msra.mxu0 %v732
    %793 = vmatprep.subr.mxu0 %v737
    %794 = vmatpush1.msra.mxu0 %v736
    %795 = vmatprep.subr.mxu0 %v741
    %796 = vmatpush1.msra.mxu0 %v740
    %797 = vmatprep.subr.mxu0 %v745
    %798 = vmatpush1.msra.mxu0 %v744
    %799 = vmatprep.subr.mxu0 %v749
    %800 = vmatpush1.msra.mxu0 %v748
    %801 = vmatprep.subr.mxu0 %v753
    %802 = vmatpush1.msra.mxu0 %v752
    %803 = vmatprep.subr.mxu0 %v757
    %804 = vmatpush1.msra.mxu0 %v756
    %805 = vmatprep.subr.mxu0 %v761
    %806 = vmatpush1.msra.mxu0 %v760
    %807 = vmatprep.subr.mxu0 %v765
    %808 = vmatpush1.msra.mxu0 %v764
    %809 = vmatprep.subr.mxu0 %v769
    %810 = vmatpush1.msra.mxu0 %v768
    %811 = vmatprep.subr.mxu0 %v773
    %812 = vmatpush1.msra.mxu0 %v772
    %813 = vmatprep.subr.mxu0 %v777
    %814 = vmatpush1.msra.mxu0 %v776
    %815 = vmatprep.subr.mxu0 0.0
    %816 = vmatpush1.msra.mxu0 0.0
    %817 = vmatprep.subr.mxu0 0.0
    %818 = vmatpush1.msra.mxu0 0.0
    %819 = vmatprep.subr.mxu0 0.0
    %820 = vmatpush1.msra.mxu0 0.0
    %821 = vmatprep.subr.mxu0 0.0
    %822 = vmatpush1.msra.mxu0 0.0
    %823 = vmatprep.subr.mxu0 0.0
    %824 = vmatpush1.msra.mxu0 0.0
    %825 = vmatprep.subr.mxu0 0.0
    %826 = vmatpush1.msra.mxu0 0.0
    %827 = vmatprep.subr.mxu0 0.0
    %828 = vmatpush1.msra.mxu0 0.0
    %829 = vmatprep.subr.mxu0 0.0
    %830 = vmatpush1.msra.mxu0 0.0
    %831 = vmatprep.subr.mxu0 0.0
    %832 = vmatpush1.msra.mxu0 0.0
    %833 = vmatprep.subr.mxu0 0.0
    %834 = vmatpush1.msra.mxu0 0.0
    %835 = vmatprep.subr.mxu0 0.0
    %836 = vmatpush1.msra.mxu0 0.0
    %837 = vmatprep.subr.mxu0 0.0
    %838 = vmatpush1.msra.mxu0 0.0
    %839 = vmatprep.subr.mxu0 0.0
    %840 = vmatpush1.msra.mxu0 0.0
    %841 = vmatprep.subr.mxu0 0.0
    %842 = vmatpush1.msra.mxu0 0.0
    %843 = vmatprep.subr.mxu0 0.0
    %844 = vmatpush1.msra.mxu0 0.0
    %845 = vmatprep.subr.mxu0 0.0
    %846 = vmatpush1.msra.mxu0 0.0
    %847 = vmatprep.mubr.f32.mxu0 0.0
    %848 = vmatmul.mubr.f32.gmra.mrb[0].mxu0 %v781
    %v849 = vpop.f32.mrb[0].mxu0
    %v850 = vadd.f32 0.0, %v849
    %v851 = vpop.f32.mrb[0].mxu0
    %v852 = vadd.f32 0.0, %v851
    %853 = vdwg.mxu0
    %854 = vmatprep.subr.mxu0 %v719
    %855 = vmatpush1.msra.mxu0 %v718
    %856 = vmatprep.subr.mxu0 %v723
    %857 = vmatpush1.msra.mxu0 %v722
    %858 = vmatprep.subr.mxu0 %v727
    %859 = vmatpush1.msra.mxu0 %v726
    %860 = vmatprep.subr.mxu0 %v731
    %861 = vmatpush1.msra.mxu0 %v730
    %862 = vmatprep.subr.mxu0 %v735
    %863 = vmatpush1.msra.mxu0 %v734
    %864 = vmatprep.subr.mxu0 %v739
    %865 = vmatpush1.msra.mxu0 %v738
    %866 = vmatprep.subr.mxu0 %v743
    %867 = vmatpush1.msra.mxu0 %v742
    %868 = vmatprep.subr.mxu0 %v747
    %869 = vmatpush1.msra.mxu0 %v746
    %870 = vmatprep.subr.mxu0 %v751
    %871 = vmatpush1.msra.mxu0 %v750
    %872 = vmatprep.subr.mxu0 %v755
    %873 = vmatpush1.msra.mxu0 %v754
    %874 = vmatprep.subr.mxu0 %v759
    %875 = vmatpush1.msra.mxu0 %v758
    %876 = vmatprep.subr.mxu0 %v763
    %877 = vmatpush1.msra.mxu0 %v762
    %878 = vmatprep.subr.mxu0 %v767
    %879 = vmatpush1.msra.mxu0 %v766
    %880 = vmatprep.subr.mxu0 %v771
    %881 = vmatpush1.msra.mxu0 %v770
    %882 = vmatprep.subr.mxu0 %v775
    %883 = vmatpush1.msra.mxu0 %v774
    %884 = vmatprep.subr.mxu0 %v779
    %885 = vmatpush1.msra.mxu0 %v778
    %886 = vmatprep.subr.mxu0 0.0
    %887 = vmatpush1.msra.mxu0 0.0
    %888 = vmatprep.subr.mxu0 0.0
    %889 = vmatpush1.msra.mxu0 0.0
    %890 = vmatprep.subr.mxu0 0.0
    %891 = vmatpush1.msra.mxu0 0.0
    %892 = vmatprep.subr.mxu0 0.0
    %893 = vmatpush1.msra.mxu0 0.0
    %894 = vmatprep.subr.mxu0 0.0
    %895 = vmatpush1.msra.mxu0 0.0
    %896 = vmatprep.subr.mxu0 0.0
    %897 = vmatpush1.msra.mxu0 0.0
    %898 = vmatprep.subr.mxu0 0.0
    %899 = vmatpush1.msra.mxu0 0.0
    %900 = vmatprep.subr.mxu0 0.0
    %901 = vmatpush1.msra.mxu0 0.0
    %902 = vmatprep.subr.mxu0 0.0
    %903 = vmatpush1.msra.mxu0 0.0
    %904 = vmatprep.subr.mxu0 0.0
    %905 = vmatpush1.msra.mxu0 0.0
    %906 = vmatprep.subr.mxu0 0.0
    %907 = vmatpush1.msra.mxu0 0.0
    %908 = vmatprep.subr.mxu0 0.0
    %909 = vmatpush1.msra.mxu0 0.0
    %910 = vmatprep.subr.mxu0 0.0
    %911 = vmatpush1.msra.mxu0 0.0
    %912 = vmatprep.subr.mxu0 0.0
    %913 = vmatpush1.msra.mxu0 0.0
    %914 = vmatprep.subr.mxu0 0.0
    %915 = vmatpush1.msra.mxu0 0.0
    %916 = vmatprep.subr.mxu0 0.0
    %917 = vmatpush1.msra.mxu0 0.0
    %918 = vmatprep.mubr.f32.mxu0 0.0
    %919 = vmatmul.mubr.f32.gmra.mrb[0].mxu0 %v781
    %v920 = vpop.f32.mrb[0].mxu0
    %v921 = vadd.f32 0.0, %v920
    %v922 = vpop.f32.mrb[0].mxu0
    %v923 = vadd.f32 0.0, %v922
    %924 = vdwg.mxu0
    %v929 = vrot.slane %v850, 6
    %v930 = vrot.slane %v852, 6
    %v931 = vrot.slane %v921, 6
    %v932 = vrot.slane %v923, 6
    %v937 = vadd.f32 %v156, %v929
    %v938 = vadd.f32 %v158, %v930
    %v939 = vadd.f32 %v227, %v931
    %v940 = vadd.f32 %v229, %v932
    %v941 = vxor.u32 %v937, 2147483648
    %v942 = vmul.f32 %v941, 1.442695
    %v943 = vpow.pop %v942
    %v944 = vadd.f32 %v943, 1.0
    %v945 = vrcp.pop %v944
    %v946 = vmul.f32 1.0, %v945
    %v947 = vxor.u32 %v938, 2147483648
    %v948 = vmul.f32 %v947, 1.442695
    %v949 = vpow.pop %v948
    %v950 = vadd.f32 %v949, 1.0
    %v951 = vrcp.pop %v950
    %v952 = vmul.f32 1.0, %v951
    %v953 = vtanh.pop %v939
    %v954 = vxor.u32 %v940, 2147483648
    %v955 = vmul.f32 %v954, 1.442695
    %v956 = vpow.pop %v955
    %v957 = vadd.f32 %v956, 1.0
    %v958 = vrcp.pop %v957
    %v959 = vmul.f32 1.0, %v958
    %v961 = vrot.slane %v712, 7
    %v963 = vmul.f32 %v952, %v961
    %v964 = vmul.f32 %v946, %v953
    %v965 = vadd.f32 %v963, %v964
    %v966 = vtanh.pop %v965
    %v967 = vmul.f32 %v959, %v966
    %968 = vst [vmem:[#allocation2] sm:$0x4] %v967
    %v969 = vld [vmem:[#allocation4] sm:$0xff]
    %v970 = vld [vmem:[#allocation4 + $0x8] sm:$0xff]
    %v971 = vld [vmem:[#allocation4 + $0x10] sm:$0xff]
    %v972 = vld [vmem:[#allocation4 + $0x18] sm:$0xff]
    %v973 = vld [vmem:[#allocation4 + $0x20] sm:$0xff]
    %v974 = vld [vmem:[#allocation4 + $0x28] sm:$0xff]
    %v975 = vld [vmem:[#allocation4 + $0x30] sm:$0xff]
    %v976 = vld [vmem:[#allocation4 + $0x38] sm:$0xff]
    %v977 = vld [vmem:[#allocation4 + $0x40] sm:$0xff]
    %v978 = vld [vmem:[#allocation4 + $0x48] sm:$0xff]
    %v979 = vld [vmem:[#allocation4 + $0x50] sm:$0xff]
    %v980 = vld [vmem:[#allocation4 + $0x58] sm:$0xff]
    %v981 = vld [vmem:[#allocation4 + $0x60] sm:$0xff]
    %v982 = vld [vmem:[#allocation4 + $0x68] sm:$0xff]
    %v983 = vld [vmem:[#allocation4 + $0x70] sm:$0xff]
    %v984 = vld [vmem:[#allocation4 + $0x78] sm:$0xff]
    %v985 = vld [vmem:[#allocation4 + $0x80] sm:$0xff]
    %v986 = vld [vmem:[#allocation4 + $0x88] sm:$0xff]
    %v987 = vld [vmem:[#allocation4 + $0x90] sm:$0xff]
    %v988 = vld [vmem:[#allocation4 + $0x98] sm:$0xff]
    %v989 = vld [vmem:[#allocation4 + $0xa0] sm:$0xff]
    %v990 = vld [vmem:[#allocation4 + $0xa8] sm:$0xff]
    %v991 = vld [vmem:[#allocation4 + $0xb0] sm:$0xff]
    %v992 = vld [vmem:[#allocation4 + $0xb8] sm:$0xff]
    %v993 = vld [vmem:[#allocation4 + $0xc0] sm:$0xff]
    %v994 = vld [vmem:[#allocation4 + $0xc8] sm:$0xff]
    %v995 = vld [vmem:[#allocation4 + $0xd0] sm:$0xff]
    %v996 = vld [vmem:[#allocation4 + $0xd8] sm:$0xff]
    %v997 = vld [vmem:[#allocation4 + $0xe0] sm:$0xff]
    %v998 = vld [vmem:[#allocation4 + $0xe8] sm:$0xff]
    %v999 = vld [vmem:[#allocation4 + $0xf0] sm:$0xff]
    %v1000 = vld [vmem:[#allocation4 + $0xf8] sm:$0xff]
    %v1001 = vld [vmem:[#allocation4 + $0x100] sm:$0xff]
    %v1002 = vld [vmem:[#allocation4 + $0x108] sm:$0xff]
    %v1003 = vld [vmem:[#allocation4 + $0x110] sm:$0xff]
    %v1004 = vld [vmem:[#allocation4 + $0x118] sm:$0xff]
    %v1005 = vld [vmem:[#allocation4 + $0x120] sm:$0xff]
    %v1006 = vld [vmem:[#allocation4 + $0x128] sm:$0xff]
    %v1007 = vld [vmem:[#allocation4 + $0x130] sm:$0xff]
    %v1008 = vld [vmem:[#allocation4 + $0x138] sm:$0xff]
    %v1009 = vld [vmem:[#allocation4 + $0x140] sm:$0xff]
    %v1010 = vld [vmem:[#allocation4 + $0x148] sm:$0xff]
    %v1011 = vld [vmem:[#allocation4 + $0x150] sm:$0xff]
    %v1012 = vld [vmem:[#allocation4 + $0x158] sm:$0xff]
    %v1013 = vld [vmem:[#allocation4 + $0x160] sm:$0xff]
    %v1014 = vld [vmem:[#allocation4 + $0x168] sm:$0xff]
    %v1015 = vld [vmem:[#allocation4 + $0x170] sm:$0xff]
    %v1016 = vld [vmem:[#allocation4 + $0x178] sm:$0xff]
    %v1017 = vld [vmem:[#allocation4 + $0x180] sm:$0xff]
    %v1018 = vld [vmem:[#allocation4 + $0x188] sm:$0xff]
    %v1019 = vld [vmem:[#allocation4 + $0x190] sm:$0xff]
    %v1020 = vld [vmem:[#allocation4 + $0x198] sm:$0xff]
    %v1021 = vld [vmem:[#allocation4 + $0x1a0] sm:$0xff]
    %v1022 = vld [vmem:[#allocation4 + $0x1a8] sm:$0xff]
    %v1023 = vld [vmem:[#allocation4 + $0x1b0] sm:$0xff]
    %v1024 = vld [vmem:[#allocation4 + $0x1b8] sm:$0xff]
    %v1025 = vld [vmem:[#allocation4 + $0x1c0] sm:$0xff]
    %v1026 = vld [vmem:[#allocation4 + $0x1c8] sm:$0xff]
    %v1027 = vld [vmem:[#allocation4 + $0x1d0] sm:$0xff]
    %v1028 = vld [vmem:[#allocation4 + $0x1d8] sm:$0xff]
    %v1029 = vld [vmem:[#allocation4 + $0x1e0] sm:$0xff]
    %v1030 = vld [vmem:[#allocation4 + $0x1e8] sm:$0xff]
    %v1031 = vld [vmem:[#allocation4 + $0x1f0] sm:$0xff]
    %v1032 = vld [vmem:[#allocation4 + $0x1f8] sm:$0xff]
    %v1034 = vrot.slane %v967, 2
    %1036 = vmatprep.subr.mxu0 %v970
    %1037 = vmatpush1.msra.mxu0 %v969
    %1038 = vmatprep.subr.mxu0 %v974
    %1039 = vmatpush1.msra.mxu0 %v973
    %1040 = vmatprep.subr.mxu0 %v978
    %1041 = vmatpush1.msra.mxu0 %v977
    %1042 = vmatprep.subr.mxu0 %v982
    %1043 = vmatpush1.msra.mxu0 %v981
    %1044 = vmatprep.subr.mxu0 %v986
    %1045 = vmatpush1.msra.mxu0 %v985
    %1046 = vmatprep.subr.mxu0 %v990
    %1047 = vmatpush1.msra.mxu0 %v989
    %1048 = vmatprep.subr.mxu0 %v994
    %1049 = vmatpush1.msra.mxu0 %v993
    %1050 = vmatprep.subr.mxu0 %v998
    %1051 = vmatpush1.msra.mxu0 %v997
    %1052 = vmatprep.subr.mxu0 %v1002
    %1053 = vmatpush1.msra.mxu0 %v1001
    %1054 = vmatprep.subr.mxu0 %v1006
    %1055 = vmatpush1.msra.mxu0 %v1005
    %1056 = vmatprep.subr.mxu0 %v1010
    %1057 = vmatpush1.msra.mxu0 %v1009
    %1058 = vmatprep.subr.mxu0 %v1014
    %1059 = vmatpush1.msra.mxu0 %v1013
    %1060 = vmatprep.subr.mxu0 %v1018
    %1061 = vmatpush1.msra.mxu0 %v1017
    %1062 = vmatprep.subr.mxu0 %v1022
    %1063 = vmatpush1.msra.mxu0 %v1021
    %1064 = vmatprep.subr.mxu0 %v1026
    %1065 = vmatpush1.msra.mxu0 %v1025
    %1066 = vmatprep.subr.mxu0 %v1030
    %1067 = vmatpush1.msra.mxu0 %v1029
    %1068 = vmatprep.subr.mxu0 0.0
    %1069 = vmatpush1.msra.mxu0 0.0
    %1070 = vmatprep.subr.mxu0 0.0
    %1071 = vmatpush1.msra.mxu0 0.0
    %1072 = vmatprep.subr.mxu0 0.0
    %1073 = vmatpush1.msra.mxu0 0.0
    %1074 = vmatprep.subr.mxu0 0.0
    %1075 = vmatpush1.msra.mxu0 0.0
    %1076 = vmatprep.subr.mxu0 0.0
    %1077 = vmatpush1.msra.mxu0 0.0
    %1078 = vmatprep.subr.mxu0 0.0
    %1079 = vmatpush1.msra.mxu0 0.0
    %1080 = vmatprep.subr.mxu0 0.0
    %1081 = vmatpush1.msra.mxu0 0.0
    %1082 = vmatprep.subr.mxu0 0.0
    %1083 = vmatpush1.msra.mxu0 0.0
    %1084 = vmatprep.subr.mxu0 0.0
    %1085 = vmatpush1.msra.mxu0 0.0
    %1086 = vmatprep.subr.mxu0 0.0
    %1087 = vmatpush1.msra.mxu0 0.0
    %1088 = vmatprep.subr.mxu0 0.0
    %1089 = vmatpush1.msra.mxu0 0.0
    %1090 = vmatprep.subr.mxu0 0.0
    %1091 = vmatpush1.msra.mxu0 0.0
    %1092 = vmatprep.subr.mxu0 0.0
    %1093 = vmatpush1.msra.mxu0 0.0
    %1094 = vmatprep.subr.mxu0 0.0
    %1095 = vmatpush1.msra.mxu0 0.0
    %1096 = vmatprep.subr.mxu0 0.0
    %1097 = vmatpush1.msra.mxu0 0.0
    %1098 = vmatprep.subr.mxu0 0.0
    %1099 = vmatpush1.msra.mxu0 0.0
    %1100 = vmatprep.mubr.f32.mxu0 0.0
    %1101 = vmatmul.mubr.f32.gmra.mrb[0].mxu0 %v1034
    %v1102 = vpop.f32.mrb[0].mxu0
    %v1103 = vadd.f32 0.0, %v1102
    %v1104 = vpop.f32.mrb[0].mxu0
    %v1105 = vadd.f32 0.0, %v1104
    %1106 = vdwg.mxu0
    %1107 = vmatprep.subr.mxu0 %v972
    %1108 = vmatpush1.msra.mxu0 %v971
    %1109 = vmatprep.subr.mxu0 %v976
    %1110 = vmatpush1.msra.mxu0 %v975
    %1111 = vmatprep.subr.mxu0 %v980
    %1112 = vmatpush1.msra.mxu0 %v979
    %1113 = vmatprep.subr.mxu0 %v984
    %1114 = vmatpush1.msra.mxu0 %v983
    %1115 = vmatprep.subr.mxu0 %v988
    %1116 = vmatpush1.msra.mxu0 %v987
    %1117 = vmatprep.subr.mxu0 %v992
    %1118 = vmatpush1.msra.mxu0 %v991
    %1119 = vmatprep.subr.mxu0 %v996
    %1120 = vmatpush1.msra.mxu0 %v995
    %1121 = vmatprep.subr.mxu0 %v1000
    %1122 = vmatpush1.msra.mxu0 %v999
    %1123 = vmatprep.subr.mxu0 %v1004
    %1124 = vmatpush1.msra.mxu0 %v1003
    %1125 = vmatprep.subr.mxu0 %v1008
    %1126 = vmatpush1.msra.mxu0 %v1007
    %1127 = vmatprep.subr.mxu0 %v1012
    %1128 = vmatpush1.msra.mxu0 %v1011
    %1129 = vmatprep.subr.mxu0 %v1016
    %1130 = vmatpush1.msra.mxu0 %v1015
    %1131 = vmatprep.subr.mxu0 %v1020
    %1132 = vmatpush1.msra.mxu0 %v1019
    %1133 = vmatprep.subr.mxu0 %v1024
    %1134 = vmatpush1.msra.mxu0 %v1023
    %1135 = vmatprep.subr.mxu0 %v1028
    %1136 = vmatpush1.msra.mxu0 %v1027
    %1137 = vmatprep.subr.mxu0 %v1032
    %1138 = vmatpush1.msra.mxu0 %v1031
    %1139 = vmatprep.subr.mxu0 0.0
    %1140 = vmatpush1.msra.mxu0 0.0
    %1141 = vmatprep.subr.mxu0 0.0
    %1142 = vmatpush1.msra.mxu0 0.0
    %1143 = vmatprep.subr.mxu0 0.0
    %1144 = vmatpush1.msra.mxu0 0.0
    %1145 = vmatprep.subr.mxu0 0.0
    %1146 = vmatpush1.msra.mxu0 0.0
    %1147 = vmatprep.subr.mxu0 0.0
    %1148 = vmatpush1.msra.mxu0 0.0
    %1149 = vmatprep.subr.mxu0 0.0
    %1150 = vmatpush1.msra.mxu0 0.0
    %1151 = vmatprep.subr.mxu0 0.0
    %1152 = vmatpush1.msra.mxu0 0.0
    %1153 = vmatprep.subr.mxu0 0.0
    %1154 = vmatpush1.msra.mxu0 0.0
    %1155 = vmatprep.subr.mxu0 0.0
    %1156 = vmatpush1.msra.mxu0 0.0
    %1157 = vmatprep.subr.mxu0 0.0
    %1158 = vmatpush1.msra.mxu0 0.0
    %1159 = vmatprep.subr.mxu0 0.0
    %1160 = vmatpush1.msra.mxu0 0.0
    %1161 = vmatprep.subr.mxu0 0.0
    %1162 = vmatpush1.msra.mxu0 0.0
    %1163 = vmatprep.subr.mxu0 0.0
    %1164 = vmatpush1.msra.mxu0 0.0
    %1165 = vmatprep.subr.mxu0 0.0
    %1166 = vmatpush1.msra.mxu0 0.0
    %1167 = vmatprep.subr.mxu0 0.0
    %1168 = vmatpush1.msra.mxu0 0.0
    %1169 = vmatprep.subr.mxu0 0.0
    %1170 = vmatpush1.msra.mxu0 0.0
    %1171 = vmatprep.mubr.f32.mxu0 0.0
    %1172 = vmatmul.mubr.f32.gmra.mrb[0].mxu0 %v1034
    %v1173 = vpop.f32.mrb[0].mxu0
    %v1174 = vadd.f32 0.0, %v1173
    %v1175 = vpop.f32.mrb[0].mxu0
    %v1176 = vadd.f32 0.0, %v1175
    %1177 = vdwg.mxu0
    %v1182 = vrot.slane %v1103, 5
    %v1183 = vrot.slane %v1105, 5
    %v1184 = vrot.slane %v1174, 5
    %v1185 = vrot.slane %v1176, 5
    %v1190 = vadd.f32 %v156, %v1182
    %v1191 = vadd.f32 %v158, %v1183
    %v1192 = vadd.f32 %v227, %v1184
    %v1193 = vadd.f32 %v229, %v1185
    %v1194 = vxor.u32 %v1190, 2147483648
    %v1195 = vmul.f32 %v1194, 1.442695
    %v1196 = vpow.pop %v1195
    %v1197 = vadd.f32 %v1196, 1.0
    %v1198 = vrcp.pop %v1197
    %v1199 = vmul.f32 1.0, %v1198
    %v1200 = vxor.u32 %v1191, 2147483648
    %v1201 = vmul.f32 %v1200, 1.442695
    %v1202 = vpow.pop %v1201
    %v1203 = vadd.f32 %v1202, 1.0
    %v1204 = vrcp.pop %v1203
    %v1205 = vmul.f32 1.0, %v1204
    %v1206 = vtanh.pop %v1192
    %v1207 = vxor.u32 %v1193, 2147483648
    %v1208 = vmul.f32 %v1207, 1.442695
    %v1209 = vpow.pop %v1208
    %v1210 = vadd.f32 %v1209, 1.0
    %v1211 = vrcp.pop %v1210
    %v1212 = vmul.f32 1.0, %v1211
    %v1214 = vrot.slane %v965, 7
    %v1216 = vmul.f32 %v1205, %v1214
    %v1217 = vmul.f32 %v1199, %v1206
    %v1218 = vadd.f32 %v1216, %v1217
    %v1219 = vtanh.pop %v1218
    %v1220 = vmul.f32 %v1212, %v1219
    %1221 = vst [vmem:[#allocation2] sm:$0x8] %v1220
    %v1222 = vld [vmem:[#allocation4] sm:$0xff]
    %v1223 = vld [vmem:[#allocation4 + $0x8] sm:$0xff]
    %v1224 = vld [vmem:[#allocation4 + $0x10] sm:$0xff]
    %v1225 = vld [vmem:[#allocation4 + $0x18] sm:$0xff]
    %v1226 = vld [vmem:[#allocation4 + $0x20] sm:$0xff]
    %v1227 = vld [vmem:[#allocation4 + $0x28] sm:$0xff]
    %v1228 = vld [vmem:[#allocation4 + $0x30] sm:$0xff]
    %v1229 = vld [vmem:[#allocation4 + $0x38] sm:$0xff]
    %v1230 = vld [vmem:[#allocation4 + $0x40] sm:$0xff]
    %v1231 = vld [vmem:[#allocation4 + $0x48] sm:$0xff]
    %v1232 = vld [vmem:[#allocation4 + $0x50] sm:$0xff]
    %v1233 = vld [vmem:[#allocation4 + $0x58] sm:$0xff]
    %v1234 = vld [vmem:[#allocation4 + $0x60] sm:$0xff]
    %v1235 = vld [vmem:[#allocation4 + $0x68] sm:$0xff]
    %v1236 = vld [vmem:[#allocation4 + $0x70] sm:$0xff]
    %v1237 = vld [vmem:[#allocation4 + $0x78] sm:$0xff]
    %v1238 = vld [vmem:[#allocation4 + $0x80] sm:$0xff]
    %v1239 = vld [vmem:[#allocation4 + $0x88] sm:$0xff]
    %v1240 = vld [vmem:[#allocation4 + $0x90] sm:$0xff]
    %v1241 = vld [vmem:[#allocation4 + $0x98] sm:$0xff]
    %v1242 = vld [vmem:[#allocation4 + $0xa0] sm:$0xff]
    %v1243 = vld [vmem:[#allocation4 + $0xa8] sm:$0xff]
    %v1244 = vld [vmem:[#allocation4 + $0xb0] sm:$0xff]
    %v1245 = vld [vmem:[#allocation4 + $0xb8] sm:$0xff]
    %v1246 = vld [vmem:[#allocation4 + $0xc0] sm:$0xff]
    %v1247 = vld [vmem:[#allocation4 + $0xc8] sm:$0xff]
    %v1248 = vld [vmem:[#allocation4 + $0xd0] sm:$0xff]
    %v1249 = vld [vmem:[#allocation4 + $0xd8] sm:$0xff]
    %v1250 = vld [vmem:[#allocation4 + $0xe0] sm:$0xff]
    %v1251 = vld [vmem:[#allocation4 + $0xe8] sm:$0xff]
    %v1252 = vld [vmem:[#allocation4 + $0xf0] sm:$0xff]
    %v1253 = vld [vmem:[#allocation4 + $0xf8] sm:$0xff]
    %v1254 = vld [vmem:[#allocation4 + $0x100] sm:$0xff]
    %v1255 = vld [vmem:[#allocation4 + $0x108] sm:$0xff]
    %v1256 = vld [vmem:[#allocation4 + $0x110] sm:$0xff]
    %v1257 = vld [vmem:[#allocation4 + $0x118] sm:$0xff]
    %v1258 = vld [vmem:[#allocation4 + $0x120] sm:$0xff]
    %v1259 = vld [vmem:[#allocation4 + $0x128] sm:$0xff]
    %v1260 = vld [vmem:[#allocation4 + $0x130] sm:$0xff]
    %v1261 = vld [vmem:[#allocation4 + $0x138] sm:$0xff]
    %v1262 = vld [vmem:[#allocation4 + $0x140] sm:$0xff]
    %v1263 = vld [vmem:[#allocation4 + $0x148] sm:$0xff]
    %v1264 = vld [vmem:[#allocation4 + $0x150] sm:$0xff]
    %v1265 = vld [vmem:[#allocation4 + $0x158] sm:$0xff]
    %v1266 = vld [vmem:[#allocation4 + $0x160] sm:$0xff]
    %v1267 = vld [vmem:[#allocation4 + $0x168] sm:$0xff]
    %v1268 = vld [vmem:[#allocation4 + $0x170] sm:$0xff]
    %v1269 = vld [vmem:[#allocation4 + $0x178] sm:$0xff]
    %v1270 = vld [vmem:[#allocation4 + $0x180] sm:$0xff]
    %v1271 = vld [vmem:[#allocation4 + $0x188] sm:$0xff]
    %v1272 = vld [vmem:[#allocation4 + $0x190] sm:$0xff]
    %v1273 = vld [vmem:[#allocation4 + $0x198] sm:$0xff]
    %v1274 = vld [vmem:[#allocation4 + $0x1a0] sm:$0xff]
    %v1275 = vld [vmem:[#allocation4 + $0x1a8] sm:$0xff]
    %v1276 = vld [vmem:[#allocation4 + $0x1b0] sm:$0xff]
    %v1277 = vld [vmem:[#allocation4 + $0x1b8] sm:$0xff]
    %v1278 = vld [vmem:[#allocation4 + $0x1c0] sm:$0xff]
    %v1279 = vld [vmem:[#allocation4 + $0x1c8] sm:$0xff]
    %v1280 = vld [vmem:[#allocation4 + $0x1d0] sm:$0xff]
    %v1281 = vld [vmem:[#allocation4 + $0x1d8] sm:$0xff]
    %v1282 = vld [vmem:[#allocation4 + $0x1e0] sm:$0xff]
    %v1283 = vld [vmem:[#allocation4 + $0x1e8] sm:$0xff]
    %v1284 = vld [vmem:[#allocation4 + $0x1f0] sm:$0xff]
    %v1285 = vld [vmem:[#allocation4 + $0x1f8] sm:$0xff]
    %v1287 = vrot.slane %v1220, 3
    %1289 = vmatprep.subr.mxu0 %v1223
    %1290 = vmatpush1.msra.mxu0 %v1222
    %1291 = vmatprep.subr.mxu0 %v1227
    %1292 = vmatpush1.msra.mxu0 %v1226
    %1293 = vmatprep.subr.mxu0 %v1231
    %1294 = vmatpush1.msra.mxu0 %v1230
    %1295 = vmatprep.subr.mxu0 %v1235
    %1296 = vmatpush1.msra.mxu0 %v1234
    %1297 = vmatprep.subr.mxu0 %v1239
    %1298 = vmatpush1.msra.mxu0 %v1238
    %1299 = vmatprep.subr.mxu0 %v1243
    %1300 = vmatpush1.msra.mxu0 %v1242
    %1301 = vmatprep.subr.mxu0 %v1247
    %1302 = vmatpush1.msra.mxu0 %v1246
    %1303 = vmatprep.subr.mxu0 %v1251
    %1304 = vmatpush1.msra.mxu0 %v1250
    %1305 = vmatprep.subr.mxu0 %v1255
    %1306 = vmatpush1.msra.mxu0 %v1254
    %1307 = vmatprep.subr.mxu0 %v1259
    %1308 = vmatpush1.msra.mxu0 %v1258
    %1309 = vmatprep.subr.mxu0 %v1263
    %1310 = vmatpush1.msra.mxu0 %v1262
    %1311 = vmatprep.subr.mxu0 %v1267
    %1312 = vmatpush1.msra.mxu0 %v1266
    %1313 = vmatprep.subr.mxu0 %v1271
    %1314 = vmatpush1.msra.mxu0 %v1270
    %1315 = vmatprep.subr.mxu0 %v1275
    %1316 = vmatpush1.msra.mxu0 %v1274
    %1317 = vmatprep.subr.mxu0 %v1279
    %1318 = vmatpush1.msra.mxu0 %v1278
    %1319 = vmatprep.subr.mxu0 %v1283
    %1320 = vmatpush1.msra.mxu0 %v1282
    %1321 = vmatprep.subr.mxu0 0.0
    %1322 = vmatpush1.msra.mxu0 0.0
    %1323 = vmatprep.subr.mxu0 0.0
    %1324 = vmatpush1.msra.mxu0 0.0
    %1325 = vmatprep.subr.mxu0 0.0
    %1326 = vmatpush1.msra.mxu0 0.0
    %1327 = vmatprep.subr.mxu0 0.0
    %1328 = vmatpush1.msra.mxu0 0.0
    %1329 = vmatprep.subr.mxu0 0.0
    %1330 = vmatpush1.msra.mxu0 0.0
    %1331 = vmatprep.subr.mxu0 0.0
    %1332 = vmatpush1.msra.mxu0 0.0
    %1333 = vmatprep.subr.mxu0 0.0
    %1334 = vmatpush1.msra.mxu0 0.0
    %1335 = vmatprep.subr.mxu0 0.0
    %1336 = vmatpush1.msra.mxu0 0.0
    %1337 = vmatprep.subr.mxu0 0.0
    %1338 = vmatpush1.msra.mxu0 0.0
    %1339 = vmatprep.subr.mxu0 0.0
    %1340 = vmatpush1.msra.mxu0 0.0
    %1341 = vmatprep.subr.mxu0 0.0
    %1342 = vmatpush1.msra.mxu0 0.0
    %1343 = vmatprep.subr.mxu0 0.0
    %1344 = vmatpush1.msra.mxu0 0.0
    %1345 = vmatprep.subr.mxu0 0.0
    %1346 = vmatpush1.msra.mxu0 0.0
    %1347 = vmatprep.subr.mxu0 0.0
    %1348 = vmatpush1.msra.mxu0 0.0
    %1349 = vmatprep.subr.mxu0 0.0
    %1350 = vmatpush1.msra.mxu0 0.0
    %1351 = vmatprep.subr.mxu0 0.0
    %1352 = vmatpush1.msra.mxu0 0.0
    %1353 = vmatprep.mubr.f32.mxu0 0.0
    %1354 = vmatmul.mubr.f32.gmra.mrb[0].mxu0 %v1287
    %v1355 = vpop.f32.mrb[0].mxu0
    %v1356 = vadd.f32 0.0, %v1355
    %v1357 = vpop.f32.mrb[0].mxu0
    %v1358 = vadd.f32 0.0, %v1357
    %1359 = vdwg.mxu0
    %1360 = vmatprep.subr.mxu0 %v1225
    %1361 = vmatpush1.msra.mxu0 %v1224
    %1362 = vmatprep.subr.mxu0 %v1229
    %1363 = vmatpush1.msra.mxu0 %v1228
    %1364 = vmatprep.subr.mxu0 %v1233
    %1365 = vmatpush1.msra.mxu0 %v1232
    %1366 = vmatprep.subr.mxu0 %v1237
    %1367 = vmatpush1.msra.mxu0 %v1236
    %1368 = vmatprep.subr.mxu0 %v1241
    %1369 = vmatpush1.msra.mxu0 %v1240
    %1370 = vmatprep.subr.mxu0 %v1245
    %1371 = vmatpush1.msra.mxu0 %v1244
    %1372 = vmatprep.subr.mxu0 %v1249
    %1373 = vmatpush1.msra.mxu0 %v1248
    %1374 = vmatprep.subr.mxu0 %v1253
    %1375 = vmatpush1.msra.mxu0 %v1252
    %1376 = vmatprep.subr.mxu0 %v1257
    %1377 = vmatpush1.msra.mxu0 %v1256
    %1378 = vmatprep.subr.mxu0 %v1261
    %1379 = vmatpush1.msra.mxu0 %v1260
    %1380 = vmatprep.subr.mxu0 %v1265
    %1381 = vmatpush1.msra.mxu0 %v1264
    %1382 = vmatprep.subr.mxu0 %v1269
    %1383 = vmatpush1.msra.mxu0 %v1268
    %1384 = vmatprep.subr.mxu0 %v1273
    %1385 = vmatpush1.msra.mxu0 %v1272
    %1386 = vmatprep.subr.mxu0 %v1277
    %1387 = vmatpush1.msra.mxu0 %v1276
    %1388 = vmatprep.subr.mxu0 %v1281
    %1389 = vmatpush1.msra.mxu0 %v1280
    %1390 = vmatprep.subr.mxu0 %v1285
    %1391 = vmatpush1.msra.mxu0 %v1284
    %1392 = vmatprep.subr.mxu0 0.0
    %1393 = vmatpush1.msra.mxu0 0.0
    %1394 = vmatprep.subr.mxu0 0.0
    %1395 = vmatpush1.msra.mxu0 0.0
    %1396 = vmatprep.subr.mxu0 0.0
    %1397 = vmatpush1.msra.mxu0 0.0
    %1398 = vmatprep.subr.mxu0 0.0
    %1399 = vmatpush1.msra.mxu0 0.0
    %1400 = vmatprep.subr.mxu0 0.0
    %1401 = vmatpush1.msra.mxu0 0.0
    %1402 = vmatprep.subr.mxu0 0.0
    %1403 = vmatpush1.msra.mxu0 0.0
    %1404 = vmatprep.subr.mxu0 0.0
    %1405 = vmatpush1.msra.mxu0 0.0
    %1406 = vmatprep.subr.mxu0 0.0
    %1407 = vmatpush1.msra.mxu0 0.0
    %1408 = vmatprep.subr.mxu0 0.0
    %1409 = vmatpush1.msra.mxu0 0.0
    %1410 = vmatprep.subr.mxu0 0.0
    %1411 = vmatpush1.msra.mxu0 0.0
    %1412 = vmatprep.subr.mxu0 0.0
    %1413 = vmatpush1.msra.mxu0 0.0
    %1414 = vmatprep.subr.mxu0 0.0
    %1415 = vmatpush1.msra.mxu0 0.0
    %1416 = vmatprep.subr.mxu0 0.0
    %1417 = vmatpush1.msra.mxu0 0.0
    %1418 = vmatprep.subr.mxu0 0.0
    %1419 = vmatpush1.msra.mxu0 0.0
    %1420 = vmatprep.subr.mxu0 0.0
    %1421 = vmatpush1.msra.mxu0 0.0
    %1422 = vmatprep.subr.mxu0 0.0
    %1423 = vmatpush1.msra.mxu0 0.0
    %1424 = vmatprep.mubr.f32.mxu0 0.0
    %1425 = vmatmul.mubr.f32.gmra.mrb[0].mxu0 %v1287
    %v1426 = vpop.f32.mrb[0].mxu0
    %v1427 = vadd.f32 0.0, %v1426
    %v1428 = vpop.f32.mrb[0].mxu0
    %v1429 = vadd.f32 0.0, %v1428
    %1430 = vdwg.mxu0
    %v1435 = vrot.slane %v1356, 4
    %v1436 = vrot.slane %v1358, 4
    %v1437 = vrot.slane %v1427, 4
    %v1438 = vrot.slane %v1429, 4
    %v1443 = vadd.f32 %v156, %v1435
    %v1444 = vadd.f32 %v158, %v1436
    %v1445 = vadd.f32 %v227, %v1437
    %v1446 = vadd.f32 %v229, %v1438
    %v1447 = vxor.u32 %v1443, 2147483648
    %v1448 = vmul.f32 %v1447, 1.442695
    %v1449 = vpow.pop %v1448
    %v1450 = vadd.f32 %v1449, 1.0
    %v1451 = vrcp.pop %v1450
    %v1452 = vmul.f32 1.0, %v1451
    %v1453 = vxor.u32 %v1444, 2147483648
    %v1454 = vmul.f32 %v1453, 1.442695
    %v1455 = vpow.pop %v1454
    %v1456 = vadd.f32 %v1455, 1.0
    %v1457 = vrcp.pop %v1456
    %v1458 = vmul.f32 1.0, %v1457
    %v1459 = vtanh.pop %v1445
    %v1460 = vxor.u32 %v1446, 2147483648
    %v1461 = vmul.f32 %v1460, 1.442695
    %v1462 = vpow.pop %v1461
    %v1463 = vadd.f32 %v1462, 1.0
    %v1464 = vrcp.pop %v1463
    %v1465 = vmul.f32 1.0, %v1464
    %v1467 = vrot.slane %v1218, 7
    %v1469 = vmul.f32 %v1458, %v1467
    %v1470 = vmul.f32 %v1452, %v1459
    %v1471 = vadd.f32 %v1469, %v1470
    %v1472 = vtanh.pop %v1471
    %v1473 = vmul.f32 %v1465, %v1472
    %1474 = vst [vmem:[#allocation2] sm:$0x10] %v1473
    %v1475 = vld [vmem:[#allocation4] sm:$0xff]
    %v1476 = vld [vmem:[#allocation4 + $0x8] sm:$0xff]
    %v1477 = vld [vmem:[#allocation4 + $0x10] sm:$0xff]
    %v1478 = vld [vmem:[#allocation4 + $0x18] sm:$0xff]
    %v1479 = vld [vmem:[#allocation4 + $0x20] sm:$0xff]
    %v1480 = vld [vmem:[#allocation4 + $0x28] sm:$0xff]
    %v1481 = vld [vmem:[#allocation4 + $0x30] sm:$0xff]
    %v1482 = vld [vmem:[#allocation4 + $0x38] sm:$0xff]
    %v1483 = vld [vmem:[#allocation4 + $0x40] sm:$0xff]
    %v1484 = vld [vmem:[#allocation4 + $0x48] sm:$0xff]
    %v1485 = vld [vmem:[#allocation4 + $0x50] sm:$0xff]
    %v1486 = vld [vmem:[#allocation4 + $0x58] sm:$0xff]
    %v1487 = vld [vmem:[#allocation4 + $0x60] sm:$0xff]
    %v1488 = vld [vmem:[#allocation4 + $0x68] sm:$0xff]
    %v1489 = vld [vmem:[#allocation4 + $0x70] sm:$0xff]
    %v1490 = vld [vmem:[#allocation4 + $0x78] sm:$0xff]
    %v1491 = vld [vmem:[#allocation4 + $0x80] sm:$0xff]
    %v1492 = vld [vmem:[#allocation4 + $0x88] sm:$0xff]
    %v1493 = vld [vmem:[#allocation4 + $0x90] sm:$0xff]
    %v1494 = vld [vmem:[#allocation4 + $0x98] sm:$0xff]
    %v1495 = vld [vmem:[#allocation4 + $0xa0] sm:$0xff]
    %v1496 = vld [vmem:[#allocation4 + $0xa8] sm:$0xff]
    %v1497 = vld [vmem:[#allocation4 + $0xb0] sm:$0xff]
    %v1498 = vld [vmem:[#allocation4 + $0xb8] sm:$0xff]
    %v1499 = vld [vmem:[#allocation4 + $0xc0] sm:$0xff]
    %v1500 = vld [vmem:[#allocation4 + $0xc8] sm:$0xff]
    %v1501 = vld [vmem:[#allocation4 + $0xd0] sm:$0xff]
    %v1502 = vld [vmem:[#allocation4 + $0xd8] sm:$0xff]
    %v1503 = vld [vmem:[#allocation4 + $0xe0] sm:$0xff]
    %v1504 = vld [vmem:[#allocation4 + $0xe8] sm:$0xff]
    %v1505 = vld [vmem:[#allocation4 + $0xf0] sm:$0xff]
    %v1506 = vld [vmem:[#allocation4 + $0xf8] sm:$0xff]
    %v1507 = vld [vmem:[#allocation4 + $0x100] sm:$0xff]
    %v1508 = vld [vmem:[#allocation4 + $0x108] sm:$0xff]
    %v1509 = vld [vmem:[#allocation4 + $0x110] sm:$0xff]
    %v1510 = vld [vmem:[#allocation4 + $0x118] sm:$0xff]
    %v1511 = vld [vmem:[#allocation4 + $0x120] sm:$0xff]
    %v1512 = vld [vmem:[#allocation4 + $0x128] sm:$0xff]
    %v1513 = vld [vmem:[#allocation4 + $0x130] sm:$0xff]
    %v1514 = vld [vmem:[#allocation4 + $0x138] sm:$0xff]
    %v1515 = vld [vmem:[#allocation4 + $0x140] sm:$0xff]
    %v1516 = vld [vmem:[#allocation4 + $0x148] sm:$0xff]
    %v1517 = vld [vmem:[#allocation4 + $0x150] sm:$0xff]
    %v1518 = vld [vmem:[#allocation4 + $0x158] sm:$0xff]
    %v1519 = vld [vmem:[#allocation4 + $0x160] sm:$0xff]
    %v1520 = vld [vmem:[#allocation4 + $0x168] sm:$0xff]
    %v1521 = vld [vmem:[#allocation4 + $0x170] sm:$0xff]
    %v1522 = vld [vmem:[#allocation4 + $0x178] sm:$0xff]
    %v1523 = vld [vmem:[#allocation4 + $0x180] sm:$0xff]
    %v1524 = vld [vmem:[#allocation4 + $0x188] sm:$0xff]
    %v1525 = vld [vmem:[#allocation4 + $0x190] sm:$0xff]
    %v1526 = vld [vmem:[#allocation4 + $0x198] sm:$0xff]
    %v1527 = vld [vmem:[#allocation4 + $0x1a0] sm:$0xff]
    %v1528 = vld [vmem:[#allocation4 + $0x1a8] sm:$0xff]
    %v1529 = vld [vmem:[#allocation4 + $0x1b0] sm:$0xff]
    %v1530 = vld [vmem:[#allocation4 + $0x1b8] sm:$0xff]
    %v1531 = vld [vmem:[#allocation4 + $0x1c0] sm:$0xff]
    %v1532 = vld [vmem:[#allocation4 + $0x1c8] sm:$0xff]
    %v1533 = vld [vmem:[#allocation4 + $0x1d0] sm:$0xff]
    %v1534 = vld [vmem:[#allocation4 + $0x1d8] sm:$0xff]
    %v1535 = vld [vmem:[#allocation4 + $0x1e0] sm:$0xff]
    %v1536 = vld [vmem:[#allocation4 + $0x1e8] sm:$0xff]
    %v1537 = vld [vmem:[#allocation4 + $0x1f0] sm:$0xff]
    %v1538 = vld [vmem:[#allocation4 + $0x1f8] sm:$0xff]
    %v1540 = vrot.slane %v1473, 4
    %1542 = vmatprep.subr.mxu0 %v1476
    %1543 = vmatpush1.msra.mxu0 %v1475
    %1544 = vmatprep.subr.mxu0 %v1480
    %1545 = vmatpush1.msra.mxu0 %v1479
    %1546 = vmatprep.subr.mxu0 %v1484
    %1547 = vmatpush1.msra.mxu0 %v1483
    %1548 = vmatprep.subr.mxu0 %v1488
    %1549 = vmatpush1.msra.mxu0 %v1487
    %1550 = vmatprep.subr.mxu0 %v1492
    %1551 = vmatpush1.msra.mxu0 %v1491
    %1552 = vmatprep.subr.mxu0 %v1496
    %1553 = vmatpush1.msra.mxu0 %v1495
    %1554 = vmatprep.subr.mxu0 %v1500
    %1555 = vmatpush1.msra.mxu0 %v1499
    %1556 = vmatprep.subr.mxu0 %v1504
    %1557 = vmatpush1.msra.mxu0 %v1503
    %1558 = vmatprep.subr.mxu0 %v1508
    %1559 = vmatpush1.msra.mxu0 %v1507
    %1560 = vmatprep.subr.mxu0 %v1512
    %1561 = vmatpush1.msra.mxu0 %v1511
    %1562 = vmatprep.subr.mxu0 %v1516
    %1563 = vmatpush1.msra.mxu0 %v1515
    %1564 = vmatprep.subr.mxu0 %v1520
    %1565 = vmatpush1.msra.mxu0 %v1519
    %1566 = vmatprep.subr.mxu0 %v1524
    %1567 = vmatpush1.msra.mxu0 %v1523
    %1568 = vmatprep.subr.mxu0 %v1528
    %1569 = vmatpush1.msra.mxu0 %v1527
    %1570 = vmatprep.subr.mxu0 %v1532
    %1571 = vmatpush1.msra.mxu0 %v1531
    %1572 = vmatprep.subr.mxu0 %v1536
    %1573 = vmatpush1.msra.mxu0 %v1535
    %1574 = vmatprep.subr.mxu0 0.0
    %1575 = vmatpush1.msra.mxu0 0.0
    %1576 = vmatprep.subr.mxu0 0.0
    %1577 = vmatpush1.msra.mxu0 0.0
    %1578 = vmatprep.subr.mxu0 0.0
    %1579 = vmatpush1.msra.mxu0 0.0
    %1580 = vmatprep.subr.mxu0 0.0
    %1581 = vmatpush1.msra.mxu0 0.0
    %1582 = vmatprep.subr.mxu0 0.0
    %1583 = vmatpush1.msra.mxu0 0.0
    %1584 = vmatprep.subr.mxu0 0.0
    %1585 = vmatpush1.msra.mxu0 0.0
    %1586 = vmatprep.subr.mxu0 0.0
    %1587 = vmatpush1.msra.mxu0 0.0
    %1588 = vmatprep.subr.mxu0 0.0
    %1589 = vmatpush1.msra.mxu0 0.0
    %1590 = vmatprep.subr.mxu0 0.0
    %1591 = vmatpush1.msra.mxu0 0.0
    %1592 = vmatprep.subr.mxu0 0.0
    %1593 = vmatpush1.msra.mxu0 0.0
    %1594 = vmatprep.subr.mxu0 0.0
    %1595 = vmatpush1.msra.mxu0 0.0
    %1596 = vmatprep.subr.mxu0 0.0
    %1597 = vmatpush1.msra.mxu0 0.0
    %1598 = vmatprep.subr.mxu0 0.0
    %1599 = vmatpush1.msra.mxu0 0.0
    %1600 = vmatprep.subr.mxu0 0.0
    %1601 = vmatpush1.msra.mxu0 0.0
    %1602 = vmatprep.subr.mxu0 0.0
    %1603 = vmatpush1.msra.mxu0 0.0
    %1604 = vmatprep.subr.mxu0 0.0
    %1605 = vmatpush1.msra.mxu0 0.0
    %1606 = vmatprep.mubr.f32.mxu0 0.0
    %1607 = vmatmul.mubr.f32.gmra.mrb[0].mxu0 %v1540
    %v1608 = vpop.f32.mrb[0].mxu0
    %v1609 = vadd.f32 0.0, %v1608
    %v1610 = vpop.f32.mrb[0].mxu0
    %v1611 = vadd.f32 0.0, %v1610
    %1612 = vdwg.mxu0
    %1613 = vmatprep.subr.mxu0 %v1478
    %1614 = vmatpush1.msra.mxu0 %v1477
    %1615 = vmatprep.subr.mxu0 %v1482
    %1616 = vmatpush1.msra.mxu0 %v1481
    %1617 = vmatprep.subr.mxu0 %v1486
    %1618 = vmatpush1.msra.mxu0 %v1485
    %1619 = vmatprep.subr.mxu0 %v1490
    %1620 = vmatpush1.msra.mxu0 %v1489
    %1621 = vmatprep.subr.mxu0 %v1494
    %1622 = vmatpush1.msra.mxu0 %v1493
    %1623 = vmatprep.subr.mxu0 %v1498
    %1624 = vmatpush1.msra.mxu0 %v1497
    %1625 = vmatprep.subr.mxu0 %v1502
    %1626 = vmatpush1.msra.mxu0 %v1501
    %1627 = vmatprep.subr.mxu0 %v1506
    %1628 = vmatpush1.msra.mxu0 %v1505
    %1629 = vmatprep.subr.mxu0 %v1510
    %1630 = vmatpush1.msra.mxu0 %v1509
    %1631 = vmatprep.subr.mxu0 %v1514
    %1632 = vmatpush1.msra.mxu0 %v1513
    %1633 = vmatprep.subr.mxu0 %v1518
    %1634 = vmatpush1.msra.mxu0 %v1517
    %1635 = vmatprep.subr.mxu0 %v1522
    %1636 = vmatpush1.msra.mxu0 %v1521
    %1637 = vmatprep.subr.mxu0 %v1526
    %1638 = vmatpush1.msra.mxu0 %v1525
    %1639 = vmatprep.subr.mxu0 %v1530
    %1640 = vmatpush1.msra.mxu0 %v1529
    %1641 = vmatprep.subr.mxu0 %v1534
    %1642 = vmatpush1.msra.mxu0 %v1533
    %1643 = vmatprep.subr.mxu0 %v1538
    %1644 = vmatpush1.msra.mxu0 %v1537
    %1645 = vmatprep.subr.mxu0 0.0
    %1646 = vmatpush1.msra.mxu0 0.0
    %1647 = vmatprep.subr.mxu0 0.0
    %1648 = vmatpush1.msra.mxu0 0.0
    %1649 = vmatprep.subr.mxu0 0.0
    %1650 = vmatpush1.msra.mxu0 0.0
    %1651 = vmatprep.subr.mxu0 0.0
    %1652 = vmatpush1.msra.mxu0 0.0
    %1653 = vmatprep.subr.mxu0 0.0
    %1654 = vmatpush1.msra.mxu0 0.0
    %1655 = vmatprep.subr.mxu0 0.0
    %1656 = vmatpush1.msra.mxu0 0.0
    %1657 = vmatprep.subr.mxu0 0.0
    %1658 = vmatpush1.msra.mxu0 0.0
    %1659 = vmatprep.subr.mxu0 0.0
    %1660 = vmatpush1.msra.mxu0 0.0
    %1661 = vmatprep.subr.mxu0 0.0
    %1662 = vmatpush1.msra.mxu0 0.0
    %1663 = vmatprep.subr.mxu0 0.0
    %1664 = vmatpush1.msra.mxu0 0.0
    %1665 = vmatprep.subr.mxu0 0.0
    %1666 = vmatpush1.msra.mxu0 0.0
    %1667 = vmatprep.subr.mxu0 0.0
    %1668 = vmatpush1.msra.mxu0 0.0
    %1669 = vmatprep.subr.mxu0 0.0
    %1670 = vmatpush1.msra.mxu0 0.0
    %1671 = vmatprep.subr.mxu0 0.0
    %1672 = vmatpush1.msra.mxu0 0.0
    %1673 = vmatprep.subr.mxu0 0.0
    %1674 = vmatpush1.msra.mxu0 0.0
    %1675 = vmatprep.subr.mxu0 0.0
    %1676 = vmatpush1.msra.mxu0 0.0
    %1677 = vmatprep.mubr.f32.mxu0 0.0
    %1678 = vmatmul.mubr.f32.gmra.mrb[0].mxu0 %v1540
    %v1679 = vpop.f32.mrb[0].mxu0
    %v1680 = vadd.f32 0.0, %v1679
    %v1681 = vpop.f32.mrb[0].mxu0
    %v1682 = vadd.f32 0.0, %v1681
    %1683 = vdwg.mxu0
    %v1688 = vrot.slane %v1609, 3
    %v1689 = vrot.slane %v1611, 3
    %v1690 = vrot.slane %v1680, 3
    %v1691 = vrot.slane %v1682, 3
    %v1696 = vadd.f32 %v156, %v1688
    %v1697 = vadd.f32 %v158, %v1689
    %v1698 = vadd.f32 %v227, %v1690
    %v1699 = vadd.f32 %v229, %v1691
    %v1700 = vxor.u32 %v1696, 2147483648
    %v1701 = vmul.f32 %v1700, 1.442695
    %v1702 = vpow.pop %v1701
    %v1703 = vadd.f32 %v1702, 1.0
    %v1704 = vrcp.pop %v1703
    %v1705 = vmul.f32 1.0, %v1704
    %v1706 = vxor.u32 %v1697, 2147483648
    %v1707 = vmul.f32 %v1706, 1.442695
    %v1708 = vpow.pop %v1707
    %v1709 = vadd.f32 %v1708, 1.0
    %v1710 = vrcp.pop %v1709
    %v1711 = vmul.f32 1.0, %v1710
    %v1712 = vtanh.pop %v1698
    %v1713 = vxor.u32 %v1699, 2147483648
    %v1714 = vmul.f32 %v1713, 1.442695
    %v1715 = vpow.pop %v1714
    %v1716 = vadd.f32 %v1715, 1.0
    %v1717 = vrcp.pop %v1716
    %v1718 = vmul.f32 1.0, %v1717
    %v1720 = vrot.slane %v1471, 7
    %v1722 = vmul.f32 %v1711, %v1720
    %v1723 = vmul.f32 %v1705, %v1712
    %v1724 = vadd.f32 %v1722, %v1723
    %v1725 = vtanh.pop %v1724
    %v1726 = vmul.f32 %v1718, %v1725
    %1727 = vst [vmem:[#allocation2] sm:$0x20] %v1726
    %v1728 = vld [vmem:[#allocation4] sm:$0xff]
    %v1729 = vld [vmem:[#allocation4 + $0x8] sm:$0xff]
    %v1730 = vld [vmem:[#allocation4 + $0x10] sm:$0xff]
    %v1731 = vld [vmem:[#allocation4 + $0x18] sm:$0xff]
    %v1732 = vld [vmem:[#allocation4 + $0x20] sm:$0xff]
    %v1733 = vld [vmem:[#allocation4 + $0x28] sm:$0xff]
    %v1734 = vld [vmem:[#allocation4 + $0x30] sm:$0xff]
    %v1735 = vld [vmem:[#allocation4 + $0x38] sm:$0xff]
    %v1736 = vld [vmem:[#allocation4 + $0x40] sm:$0xff]
    %v1737 = vld [vmem:[#allocation4 + $0x48] sm:$0xff]
    %v1738 = vld [vmem:[#allocation4 + $0x50] sm:$0xff]
    %v1739 = vld [vmem:[#allocation4 + $0x58] sm:$0xff]
    %v1740 = vld [vmem:[#allocation4 + $0x60] sm:$0xff]
    %v1741 = vld [vmem:[#allocation4 + $0x68] sm:$0xff]
    %v1742 = vld [vmem:[#allocation4 + $0x70] sm:$0xff]
    %v1743 = vld [vmem:[#allocation4 + $0x78] sm:$0xff]
    %v1744 = vld [vmem:[#allocation4 + $0x80] sm:$0xff]
    %v1745 = vld [vmem:[#allocation4 + $0x88] sm:$0xff]
    %v1746 = vld [vmem:[#allocation4 + $0x90] sm:$0xff]
    %v1747 = vld [vmem:[#allocation4 + $0x98] sm:$0xff]
    %v1748 = vld [vmem:[#allocation4 + $0xa0] sm:$0xff]
    %v1749 = vld [vmem:[#allocation4 + $0xa8] sm:$0xff]
    %v1750 = vld [vmem:[#allocation4 + $0xb0] sm:$0xff]
    %v1751 = vld [vmem:[#allocation4 + $0xb8] sm:$0xff]
    %v1752 = vld [vmem:[#allocation4 + $0xc0] sm:$0xff]
    %v1753 = vld [vmem:[#allocation4 + $0xc8] sm:$0xff]
    %v1754 = vld [vmem:[#allocation4 + $0xd0] sm:$0xff]
    %v1755 = vld [vmem:[#allocation4 + $0xd8] sm:$0xff]
    %v1756 = vld [vmem:[#allocation4 + $0xe0] sm:$0xff]
    %v1757 = vld [vmem:[#allocation4 + $0xe8] sm:$0xff]
    %v1758 = vld [vmem:[#allocation4 + $0xf0] sm:$0xff]
    %v1759 = vld [vmem:[#allocation4 + $0xf8] sm:$0xff]
    %v1760 = vld [vmem:[#allocation4 + $0x100] sm:$0xff]
    %v1761 = vld [vmem:[#allocation4 + $0x108] sm:$0xff]
    %v1762 = vld [vmem:[#allocation4 + $0x110] sm:$0xff]
    %v1763 = vld [vmem:[#allocation4 + $0x118] sm:$0xff]
    %v1764 = vld [vmem:[#allocation4 + $0x120] sm:$0xff]
    %v1765 = vld [vmem:[#allocation4 + $0x128] sm:$0xff]
    %v1766 = vld [vmem:[#allocation4 + $0x130] sm:$0xff]
    %v1767 = vld [vmem:[#allocation4 + $0x138] sm:$0xff]
    %v1768 = vld [vmem:[#allocation4 + $0x140] sm:$0xff]
    %v1769 = vld [vmem:[#allocation4 + $0x148] sm:$0xff]
    %v1770 = vld [vmem:[#allocation4 + $0x150] sm:$0xff]
    %v1771 = vld [vmem:[#allocation4 + $0x158] sm:$0xff]
    %v1772 = vld [vmem:[#allocation4 + $0x160] sm:$0xff]
    %v1773 = vld [vmem:[#allocation4 + $0x168] sm:$0xff]
    %v1774 = vld [vmem:[#allocation4 + $0x170] sm:$0xff]
    %v1775 = vld [vmem:[#allocation4 + $0x178] sm:$0xff]
    %v1776 = vld [vmem:[#allocation4 + $0x180] sm:$0xff]
    %v1777 = vld [vmem:[#allocation4 + $0x188] sm:$0xff]
    %v1778 = vld [vmem:[#allocation4 + $0x190] sm:$0xff]
    %v1779 = vld [vmem:[#allocation4 + $0x198] sm:$0xff]
    %v1780 = vld [vmem:[#allocation4 + $0x1a0] sm:$0xff]
    %v1781 = vld [vmem:[#allocation4 + $0x1a8] sm:$0xff]
    %v1782 = vld [vmem:[#allocation4 + $0x1b0] sm:$0xff]
    %v1783 = vld [vmem:[#allocation4 + $0x1b8] sm:$0xff]
    %v1784 = vld [vmem:[#allocation4 + $0x1c0] sm:$0xff]
    %v1785 = vld [vmem:[#allocation4 + $0x1c8] sm:$0xff]
    %v1786 = vld [vmem:[#allocation4 + $0x1d0] sm:$0xff]
    %v1787 = vld [vmem:[#allocation4 + $0x1d8] sm:$0xff]
    %v1788 = vld [vmem:[#allocation4 + $0x1e0] sm:$0xff]
    %v1789 = vld [vmem:[#allocation4 + $0x1e8] sm:$0xff]
    %v1790 = vld [vmem:[#allocation4 + $0x1f0] sm:$0xff]
    %v1791 = vld [vmem:[#allocation4 + $0x1f8] sm:$0xff]
    %v1793 = vrot.slane %v1726, 5
    %1795 = vmatprep.subr.mxu0 %v1729
    %1796 = vmatpush1.msra.mxu0 %v1728
    %1797 = vmatprep.subr.mxu0 %v1733
    %1798 = vmatpush1.msra.mxu0 %v1732
    %1799 = vmatprep.subr.mxu0 %v1737
    %1800 = vmatpush1.msra.mxu0 %v1736
    %1801 = vmatprep.subr.mxu0 %v1741
    %1802 = vmatpush1.msra.mxu0 %v1740
    %1803 = vmatprep.subr.mxu0 %v1745
    %1804 = vmatpush1.msra.mxu0 %v1744
    %1805 = vmatprep.subr.mxu0 %v1749
    %1806 = vmatpush1.msra.mxu0 %v1748
    %1807 = vmatprep.subr.mxu0 %v1753
    %1808 = vmatpush1.msra.mxu0 %v1752
    %1809 = vmatprep.subr.mxu0 %v1757
    %1810 = vmatpush1.msra.mxu0 %v1756
    %1811 = vmatprep.subr.mxu0 %v1761
    %1812 = vmatpush1.msra.mxu0 %v1760
    %1813 = vmatprep.subr.mxu0 %v1765
    %1814 = vmatpush1.msra.mxu0 %v1764
    %1815 = vmatprep.subr.mxu0 %v1769
    %1816 = vmatpush1.msra.mxu0 %v1768
    %1817 = vmatprep.subr.mxu0 %v1773
    %1818 = vmatpush1.msra.mxu0 %v1772
    %1819 = vmatprep.subr.mxu0 %v1777
    %1820 = vmatpush1.msra.mxu0 %v1776
    %1821 = vmatprep.subr.mxu0 %v1781
    %1822 = vmatpush1.msra.mxu0 %v1780
    %1823 = vmatprep.subr.mxu0 %v1785
    %1824 = vmatpush1.msra.mxu0 %v1784
    %1825 = vmatprep.subr.mxu0 %v1789
    %1826 = vmatpush1.msra.mxu0 %v1788
    %1827 = vmatprep.subr.mxu0 0.0
    %1828 = vmatpush1.msra.mxu0 0.0
    %1829 = vmatprep.subr.mxu0 0.0
    %1830 = vmatpush1.msra.mxu0 0.0
    %1831 = vmatprep.subr.mxu0 0.0
    %1832 = vmatpush1.msra.mxu0 0.0
    %1833 = vmatprep.subr.mxu0 0.0
    %1834 = vmatpush1.msra.mxu0 0.0
    %1835 = vmatprep.subr.mxu0 0.0
    %1836 = vmatpush1.msra.mxu0 0.0
    %1837 = vmatprep.subr.mxu0 0.0
    %1838 = vmatpush1.msra.mxu0 0.0
    %1839 = vmatprep.subr.mxu0 0.0
    %1840 = vmatpush1.msra.mxu0 0.0
    %1841 = vmatprep.subr.mxu0 0.0
    %1842 = vmatpush1.msra.mxu0 0.0
    %1843 = vmatprep.subr.mxu0 0.0
    %1844 = vmatpush1.msra.mxu0 0.0
    %1845 = vmatprep.subr.mxu0 0.0
    %1846 = vmatpush1.msra.mxu0 0.0
    %1847 = vmatprep.subr.mxu0 0.0
    %1848 = vmatpush1.msra.mxu0 0.0
    %1849 = vmatprep.subr.mxu0 0.0
    %1850 = vmatpush1.msra.mxu0 0.0
    %1851 = vmatprep.subr.mxu0 0.0
    %1852 = vmatpush1.msra.mxu0 0.0
    %1853 = vmatprep.subr.mxu0 0.0
    %1854 = vmatpush1.msra.mxu0 0.0
    %1855 = vmatprep.subr.mxu0 0.0
    %1856 = vmatpush1.msra.mxu0 0.0
    %1857 = vmatprep.subr.mxu0 0.0
    %1858 = vmatpush1.msra.mxu0 0.0
    %1859 = vmatprep.mubr.f32.mxu0 0.0
    %1860 = vmatmul.mubr.f32.gmra.mrb[0].mxu0 %v1793
    %v1861 = vpop.f32.mrb[0].mxu0
    %v1862 = vadd.f32 0.0, %v1861
    %v1863 = vpop.f32.mrb[0].mxu0
    %v1864 = vadd.f32 0.0, %v1863
    %1865 = vdwg.mxu0
    %1866 = vmatprep.subr.mxu0 %v1731
    %1867 = vmatpush1.msra.mxu0 %v1730
    %1868 = vmatprep.subr.mxu0 %v1735
    %1869 = vmatpush1.msra.mxu0 %v1734
    %1870 = vmatprep.subr.mxu0 %v1739
    %1871 = vmatpush1.msra.mxu0 %v1738
    %1872 = vmatprep.subr.mxu0 %v1743
    %1873 = vmatpush1.msra.mxu0 %v1742
    %1874 = vmatprep.subr.mxu0 %v1747
    %1875 = vmatpush1.msra.mxu0 %v1746
    %1876 = vmatprep.subr.mxu0 %v1751
    %1877 = vmatpush1.msra.mxu0 %v1750
    %1878 = vmatprep.subr.mxu0 %v1755
    %1879 = vmatpush1.msra.mxu0 %v1754
    %1880 = vmatprep.subr.mxu0 %v1759
    %1881 = vmatpush1.msra.mxu0 %v1758
    %1882 = vmatprep.subr.mxu0 %v1763
    %1883 = vmatpush1.msra.mxu0 %v1762
    %1884 = vmatprep.subr.mxu0 %v1767
    %1885 = vmatpush1.msra.mxu0 %v1766
    %1886 = vmatprep.subr.mxu0 %v1771
    %1887 = vmatpush1.msra.mxu0 %v1770
    %1888 = vmatprep.subr.mxu0 %v1775
    %1889 = vmatpush1.msra.mxu0 %v1774
    %1890 = vmatprep.subr.mxu0 %v1779
    %1891 = vmatpush1.msra.mxu0 %v1778
    %1892 = vmatprep.subr.mxu0 %v1783
    %1893 = vmatpush1.msra.mxu0 %v1782
    %1894 = vmatprep.subr.mxu0 %v1787
    %1895 = vmatpush1.msra.mxu0 %v1786
    %1896 = vmatprep.subr.mxu0 %v1791
    %1897 = vmatpush1.msra.mxu0 %v1790
    %1898 = vmatprep.subr.mxu0 0.0
    %1899 = vmatpush1.msra.mxu0 0.0
    %1900 = vmatprep.subr.mxu0 0.0
    %1901 = vmatpush1.msra.mxu0 0.0
    %1902 = vmatprep.subr.mxu0 0.0
    %1903 = vmatpush1.msra.mxu0 0.0
    %1904 = vmatprep.subr.mxu0 0.0
    %1905 = vmatpush1.msra.mxu0 0.0
    %1906 = vmatprep.subr.mxu0 0.0
    %1907 = vmatpush1.msra.mxu0 0.0
    %1908 = vmatprep.subr.mxu0 0.0
    %1909 = vmatpush1.msra.mxu0 0.0
    %1910 = vmatprep.subr.mxu0 0.0
    %1911 = vmatpush1.msra.mxu0 0.0
    %1912 = vmatprep.subr.mxu0 0.0
    %1913 = vmatpush1.msra.mxu0 0.0
    %1914 = vmatprep.subr.mxu0 0.0
    %1915 = vmatpush1.msra.mxu0 0.0
    %1916 = vmatprep.subr.mxu0 0.0
    %1917 = vmatpush1.msra.mxu0 0.0
    %1918 = vmatprep.subr.mxu0 0.0
    %1919 = vmatpush1.msra.mxu0 0.0
    %1920 = vmatprep.subr.mxu0 0.0
    %1921 = vmatpush1.msra.mxu0 0.0
    %1922 = vmatprep.subr.mxu0 0.0
    %1923 = vmatpush1.msra.mxu0 0.0
    %1924 = vmatprep.subr.mxu0 0.0
    %1925 = vmatpush1.msra.mxu0 0.0
    %1926 = vmatprep.subr.mxu0 0.0
    %1927 = vmatpush1.msra.mxu0 0.0
    %1928 = vmatprep.subr.mxu0 0.0
    %1929 = vmatpush1.msra.mxu0 0.0
    %1930 = vmatprep.mubr.f32.mxu0 0.0
    %1931 = vmatmul.mubr.f32.gmra.mrb[0].mxu0 %v1793
    %v1932 = vpop.f32.mrb[0].mxu0
    %v1933 = vadd.f32 0.0, %v1932
    %v1934 = vpop.f32.mrb[0].mxu0
    %v1935 = vadd.f32 0.0, %v1934
    %1936 = vdwg.mxu0
    %v1941 = vrot.slane %v1862, 2
    %v1942 = vrot.slane %v1864, 2
    %v1943 = vrot.slane %v1933, 2
    %v1944 = vrot.slane %v1935, 2
    %v1949 = vadd.f32 %v156, %v1941
    %v1950 = vadd.f32 %v158, %v1942
    %v1951 = vadd.f32 %v227, %v1943
    %v1952 = vadd.f32 %v229, %v1944
    %v1953 = vxor.u32 %v1949, 2147483648
    %v1954 = vmul.f32 %v1953, 1.442695
    %v1955 = vpow.pop %v1954
    %v1956 = vadd.f32 %v1955, 1.0
    %v1957 = vrcp.pop %v1956
    %v1958 = vmul.f32 1.0, %v1957
    %v1959 = vxor.u32 %v1950, 2147483648
    %v1960 = vmul.f32 %v1959, 1.442695
    %v1961 = vpow.pop %v1960
    %v1962 = vadd.f32 %v1961, 1.0
    %v1963 = vrcp.pop %v1962
    %v1964 = vmul.f32 1.0, %v1963
    %v1965 = vtanh.pop %v1951
    %v1966 = vxor.u32 %v1952, 2147483648
    %v1967 = vmul.f32 %v1966, 1.442695
    %v1968 = vpow.pop %v1967
    %v1969 = vadd.f32 %v1968, 1.0
    %v1970 = vrcp.pop %v1969
    %v1971 = vmul.f32 1.0, %v1970
    %v1973 = vrot.slane %v1724, 7
    %v1975 = vmul.f32 %v1964, %v1973
    %v1976 = vmul.f32 %v1958, %v1965
    %v1977 = vadd.f32 %v1975, %v1976
    %v1978 = vtanh.pop %v1977
    %v1979 = vmul.f32 %v1971, %v1978
    %1980 = vst [vmem:[#allocation2] sm:$0x40] %v1979
    %v1981 = vld [vmem:[#allocation4] sm:$0xff]
    %v1982 = vld [vmem:[#allocation4 + $0x8] sm:$0xff]
    %v1983 = vld [vmem:[#allocation4 + $0x10] sm:$0xff]
    %v1984 = vld [vmem:[#allocation4 + $0x18] sm:$0xff]
    %v1985 = vld [vmem:[#allocation4 + $0x20] sm:$0xff]
    %v1986 = vld [vmem:[#allocation4 + $0x28] sm:$0xff]
    %v1987 = vld [vmem:[#allocation4 + $0x30] sm:$0xff]
    %v1988 = vld [vmem:[#allocation4 + $0x38] sm:$0xff]
    %v1989 = vld [vmem:[#allocation4 + $0x40] sm:$0xff]
    %v1990 = vld [vmem:[#allocation4 + $0x48] sm:$0xff]
    %v1991 = vld [vmem:[#allocation4 + $0x50] sm:$0xff]
    %v1992 = vld [vmem:[#allocation4 + $0x58] sm:$0xff]
    %v1993 = vld [vmem:[#allocation4 + $0x60] sm:$0xff]
    %v1994 = vld [vmem:[#allocation4 + $0x68] sm:$0xff]
    %v1995 = vld [vmem:[#allocation4 + $0x70] sm:$0xff]
    %v1996 = vld [vmem:[#allocation4 + $0x78] sm:$0xff]
    %v1997 = vld [vmem:[#allocation4 + $0x80] sm:$0xff]
    %v1998 = vld [vmem:[#allocation4 + $0x88] sm:$0xff]
    %v1999 = vld [vmem:[#allocation4 + $0x90] sm:$0xff]
    %v2000 = vld [vmem:[#allocation4 + $0x98] sm:$0xff]
    %v2001 = vld [vmem:[#allocation4 + $0xa0] sm:$0xff]
    %v2002 = vld [vmem:[#allocation4 + $0xa8] sm:$0xff]
    %v2003 = vld [vmem:[#allocation4 + $0xb0] sm:$0xff]
    %v2004 = vld [vmem:[#allocation4 + $0xb8] sm:$0xff]
    %v2005 = vld [vmem:[#allocation4 + $0xc0] sm:$0xff]
    %v2006 = vld [vmem:[#allocation4 + $0xc8] sm:$0xff]
    %v2007 = vld [vmem:[#allocation4 + $0xd0] sm:$0xff]
    %v2008 = vld [vmem:[#allocation4 + $0xd8] sm:$0xff]
    %v2009 = vld [vmem:[#allocation4 + $0xe0] sm:$0xff]
    %v2010 = vld [vmem:[#allocation4 + $0xe8] sm:$0xff]
    %v2011 = vld [vmem:[#allocation4 + $0xf0] sm:$0xff]
    %v2012 = vld [vmem:[#allocation4 + $0xf8] sm:$0xff]
    %v2013 = vld [vmem:[#allocation4 + $0x100] sm:$0xff]
    %v2014 = vld [vmem:[#allocation4 + $0x108] sm:$0xff]
    %v2015 = vld [vmem:[#allocation4 + $0x110] sm:$0xff]
    %v2016 = vld [vmem:[#allocation4 + $0x118] sm:$0xff]
    %v2017 = vld [vmem:[#allocation4 + $0x120] sm:$0xff]
    %v2018 = vld [vmem:[#allocation4 + $0x128] sm:$0xff]
    %v2019 = vld [vmem:[#allocation4 + $0x130] sm:$0xff]
    %v2020 = vld [vmem:[#allocation4 + $0x138] sm:$0xff]
    %v2021 = vld [vmem:[#allocation4 + $0x140] sm:$0xff]
    %v2022 = vld [vmem:[#allocation4 + $0x148] sm:$0xff]
    %v2023 = vld [vmem:[#allocation4 + $0x150] sm:$0xff]
    %v2024 = vld [vmem:[#allocation4 + $0x158] sm:$0xff]
    %v2025 = vld [vmem:[#allocation4 + $0x160] sm:$0xff]
    %v2026 = vld [vmem:[#allocation4 + $0x168] sm:$0xff]
    %v2027 = vld [vmem:[#allocation4 + $0x170] sm:$0xff]
    %v2028 = vld [vmem:[#allocation4 + $0x178] sm:$0xff]
    %v2029 = vld [vmem:[#allocation4 + $0x180] sm:$0xff]
    %v2030 = vld [vmem:[#allocation4 + $0x188] sm:$0xff]
    %v2031 = vld [vmem:[#allocation4 + $0x190] sm:$0xff]
    %v2032 = vld [vmem:[#allocation4 + $0x198] sm:$0xff]
    %v2033 = vld [vmem:[#allocation4 + $0x1a0] sm:$0xff]
    %v2034 = vld [vmem:[#allocation4 + $0x1a8] sm:$0xff]
    %v2035 = vld [vmem:[#allocation4 + $0x1b0] sm:$0xff]
    %v2036 = vld [vmem:[#allocation4 + $0x1b8] sm:$0xff]
    %v2037 = vld [vmem:[#allocation4 + $0x1c0] sm:$0xff]
    %v2038 = vld [vmem:[#allocation4 + $0x1c8] sm:$0xff]
    %v2039 = vld [vmem:[#allocation4 + $0x1d0] sm:$0xff]
    %v2040 = vld [vmem:[#allocation4 + $0x1d8] sm:$0xff]
    %v2041 = vld [vmem:[#allocation4 + $0x1e0] sm:$0xff]
    %v2042 = vld [vmem:[#allocation4 + $0x1e8] sm:$0xff]
    %v2043 = vld [vmem:[#allocation4 + $0x1f0] sm:$0xff]
    %v2044 = vld [vmem:[#allocation4 + $0x1f8] sm:$0xff]
    %v2046 = vrot.slane %v1979, 6
    %2048 = vmatprep.subr.mxu0 %v1982
    %2049 = vmatpush1.msra.mxu0 %v1981
    %2050 = vmatprep.subr.mxu0 %v1986
    %2051 = vmatpush1.msra.mxu0 %v1985
    %2052 = vmatprep.subr.mxu0 %v1990
    %2053 = vmatpush1.msra.mxu0 %v1989
    %2054 = vmatprep.subr.mxu0 %v1994
    %2055 = vmatpush1.msra.mxu0 %v1993
    %2056 = vmatprep.subr.mxu0 %v1998
    %2057 = vmatpush1.msra.mxu0 %v1997
    %2058 = vmatprep.subr.mxu0 %v2002
    %2059 = vmatpush1.msra.mxu0 %v2001
    %2060 = vmatprep.subr.mxu0 %v2006
    %2061 = vmatpush1.msra.mxu0 %v2005
    %2062 = vmatprep.subr.mxu0 %v2010
    %2063 = vmatpush1.msra.mxu0 %v2009
    %2064 = vmatprep.subr.mxu0 %v2014
    %2065 = vmatpush1.msra.mxu0 %v2013
    %2066 = vmatprep.subr.mxu0 %v2018
    %2067 = vmatpush1.msra.mxu0 %v2017
    %2068 = vmatprep.subr.mxu0 %v2022
    %2069 = vmatpush1.msra.mxu0 %v2021
    %2070 = vmatprep.subr.mxu0 %v2026
    %2071 = vmatpush1.msra.mxu0 %v2025
    %2072 = vmatprep.subr.mxu0 %v2030
    %2073 = vmatpush1.msra.mxu0 %v2029
    %2074 = vmatprep.subr.mxu0 %v2034
    %2075 = vmatpush1.msra.mxu0 %v2033
    %2076 = vmatprep.subr.mxu0 %v2038
    %2077 = vmatpush1.msra.mxu0 %v2037
    %2078 = vmatprep.subr.mxu0 %v2042
    %2079 = vmatpush1.msra.mxu0 %v2041
    %2080 = vmatprep.subr.mxu0 0.0
    %2081 = vmatpush1.msra.mxu0 0.0
    %2082 = vmatprep.subr.mxu0 0.0
    %2083 = vmatpush1.msra.mxu0 0.0
    %2084 = vmatprep.subr.mxu0 0.0
    %2085 = vmatpush1.msra.mxu0 0.0
    %2086 = vmatprep.subr.mxu0 0.0
    %2087 = vmatpush1.msra.mxu0 0.0
    %2088 = vmatprep.subr.mxu0 0.0
    %2089 = vmatpush1.msra.mxu0 0.0
    %2090 = vmatprep.subr.mxu0 0.0
    %2091 = vmatpush1.msra.mxu0 0.0
    %2092 = vmatprep.subr.mxu0 0.0
    %2093 = vmatpush1.msra.mxu0 0.0
    %2094 = vmatprep.subr.mxu0 0.0
    %2095 = vmatpush1.msra.mxu0 0.0
    %2096 = vmatprep.subr.mxu0 0.0
    %2097 = vmatpush1.msra.mxu0 0.0
    %2098 = vmatprep.subr.mxu0 0.0
    %2099 = vmatpush1.msra.mxu0 0.0
    %2100 = vmatprep.subr.mxu0 0.0
    %2101 = vmatpush1.msra.mxu0 0.0
    %2102 = vmatprep.subr.mxu0 0.0
    %2103 = vmatpush1.msra.mxu0 0.0
    %2104 = vmatprep.subr.mxu0 0.0
    %2105 = vmatpush1.msra.mxu0 0.0
    %2106 = vmatprep.subr.mxu0 0.0
    %2107 = vmatpush1.msra.mxu0 0.0
    %2108 = vmatprep.subr.mxu0 0.0
    %2109 = vmatpush1.msra.mxu0 0.0
    %2110 = vmatprep.subr.mxu0 0.0
    %2111 = vmatpush1.msra.mxu0 0.0
    %2112 = vmatprep.mubr.f32.mxu0 0.0
    %2113 = vmatmul.mubr.f32.gmra.mrb[0].mxu0 %v2046
    %v2114 = vpop.f32.mrb[0].mxu0
    %v2115 = vadd.f32 0.0, %v2114
    %v2116 = vpop.f32.mrb[0].mxu0
    %v2117 = vadd.f32 0.0, %v2116
    %2118 = vdwg.mxu0
    %2119 = vmatprep.subr.mxu0 %v1984
    %2120 = vmatpush1.msra.mxu0 %v1983
    %2121 = vmatprep.subr.mxu0 %v1988
    %2122 = vmatpush1.msra.mxu0 %v1987
    %2123 = vmatprep.subr.mxu0 %v1992
    %2124 = vmatpush1.msra.mxu0 %v1991
    %2125 = vmatprep.subr.mxu0 %v1996
    %2126 = vmatpush1.msra.mxu0 %v1995
    %2127 = vmatprep.subr.mxu0 %v2000
    %2128 = vmatpush1.msra.mxu0 %v1999
    %2129 = vmatprep.subr.mxu0 %v2004
    %2130 = vmatpush1.msra.mxu0 %v2003
    %2131 = vmatprep.subr.mxu0 %v2008
    %2132 = vmatpush1.msra.mxu0 %v2007
    %2133 = vmatprep.subr.mxu0 %v2012
    %2134 = vmatpush1.msra.mxu0 %v2011
    %2135 = vmatprep.subr.mxu0 %v2016
    %2136 = vmatpush1.msra.mxu0 %v2015
    %2137 = vmatprep.subr.mxu0 %v2020
    %2138 = vmatpush1.msra.mxu0 %v2019
    %2139 = vmatprep.subr.mxu0 %v2024
    %2140 = vmatpush1.msra.mxu0 %v2023
    %2141 = vmatprep.subr.mxu0 %v2028
    %2142 = vmatpush1.msra.mxu0 %v2027
    %2143 = vmatprep.subr.mxu0 %v2032
    %2144 = vmatpush1.msra.mxu0 %v2031
    %2145 = vmatprep.subr.mxu0 %v2036
    %2146 = vmatpush1.msra.mxu0 %v2035
    %2147 = vmatprep.subr.mxu0 %v2040
    %2148 = vmatpush1.msra.mxu0 %v2039
    %2149 = vmatprep.subr.mxu0 %v2044
    %2150 = vmatpush1.msra.mxu0 %v2043
    %2151 = vmatprep.subr.mxu0 0.0
    %2152 = vmatpush1.msra.mxu0 0.0
    %2153 = vmatprep.subr.mxu0 0.0
    %2154 = vmatpush1.msra.mxu0 0.0
    %2155 = vmatprep.subr.mxu0 0.0
    %2156 = vmatpush1.msra.mxu0 0.0
    %2157 = vmatprep.subr.mxu0 0.0
    %2158 = vmatpush1.msra.mxu0 0.0
    %2159 = vmatprep.subr.mxu0 0.0
    %2160 = vmatpush1.msra.mxu0 0.0
    %2161 = vmatprep.subr.mxu0 0.0
    %2162 = vmatpush1.msra.mxu0 0.0
    %2163 = vmatprep.subr.mxu0 0.0
    %2164 = vmatpush1.msra.mxu0 0.0
    %2165 = vmatprep.subr.mxu0 0.0
    %2166 = vmatpush1.msra.mxu0 0.0
    %2167 = vmatprep.subr.mxu0 0.0
    %2168 = vmatpush1.msra.mxu0 0.0
    %2169 = vmatprep.subr.mxu0 0.0
    %2170 = vmatpush1.msra.mxu0 0.0
    %2171 = vmatprep.subr.mxu0 0.0
    %2172 = vmatpush1.msra.mxu0 0.0
    %2173 = vmatprep.subr.mxu0 0.0
    %2174 = vmatpush1.msra.mxu0 0.0
    %2175 = vmatprep.subr.mxu0 0.0
    %2176 = vmatpush1.msra.mxu0 0.0
    %2177 = vmatprep.subr.mxu0 0.0
    %2178 = vmatpush1.msra.mxu0 0.0
    %2179 = vmatprep.subr.mxu0 0.0
    %2180 = vmatpush1.msra.mxu0 0.0
    %2181 = vmatprep.subr.mxu0 0.0
    %2182 = vmatpush1.msra.mxu0 0.0
    %2183 = vmatprep.mubr.f32.mxu0 0.0
    %2184 = vmatmul.mubr.f32.gmra.mrb[0].mxu0 %v2046
    %v2185 = vpop.f32.mrb[0].mxu0
    %v2186 = vadd.f32 0.0, %v2185
    %v2187 = vpop.f32.mrb[0].mxu0
    %v2188 = vadd.f32 0.0, %v2187
    %2189 = vdwg.mxu0
    %v2194 = vrot.slane %v2115, 1
    %v2195 = vrot.slane %v2117, 1
    %v2196 = vrot.slane %v2186, 1
    %v2197 = vrot.slane %v2188, 1
    %v2202 = vadd.f32 %v156, %v2194
    %v2203 = vadd.f32 %v158, %v2195
    %v2204 = vadd.f32 %v227, %v2196
    %v2205 = vadd.f32 %v229, %v2197
    %v2206 = vxor.u32 %v2202, 2147483648
    %v2207 = vmul.f32 %v2206, 1.442695
    %v2208 = vpow.pop %v2207
    %v2209 = vadd.f32 %v2208, 1.0
    %v2210 = vrcp.pop %v2209
    %v2211 = vmul.f32 1.0, %v2210
    %v2212 = vxor.u32 %v2203, 2147483648
    %v2213 = vmul.f32 %v2212, 1.442695
    %v2214 = vpow.pop %v2213
    %v2215 = vadd.f32 %v2214, 1.0
    %v2216 = vrcp.pop %v2215
    %v2217 = vmul.f32 1.0, %v2216
    %v2218 = vtanh.pop %v2204
    %v2219 = vxor.u32 %v2205, 2147483648
    %v2220 = vmul.f32 %v2219, 1.442695
    %v2221 = vpow.pop %v2220
    %v2222 = vadd.f32 %v2221, 1.0
    %v2223 = vrcp.pop %v2222
    %v2224 = vmul.f32 1.0, %v2223
    %v2226 = vrot.slane %v1977, 7
    %v2228 = vmul.f32 %v2217, %v2226
    %v2229 = vmul.f32 %v2211, %v2218
    %v2230 = vadd.f32 %v2228, %v2229
    %v2231 = vtanh.pop %v2230
    %v2232 = vmul.f32 %v2224, %v2231
    %2233 = vst [vmem:[#allocation2] sm:$0x80] %v2232
    %v2234 = vld [vmem:[#allocation2] sm:$0xff]
    %v2235 = vld [vmem:[%s4] sm:$0xff]
    %v2236 = vld [vmem:[%s4 + $0x8] sm:$0xff]
    %v2237 = vld [vmem:[%s4 + $0x10] sm:$0xff]
    %v2238 = vld [vmem:[%s4 + $0x18] sm:$0xff]
    %v2239 = vld [vmem:[%s4 + $0x20] sm:$0xff]
    %v2240 = vld [vmem:[%s4 + $0x28] sm:$0xff]
    %v2241 = vld [vmem:[%s4 + $0x30] sm:$0xff]
    %v2242 = vld [vmem:[%s4 + $0x38] sm:$0xff]
    %v2243 = vld [vmem:[%s4 + $0x40] sm:$0xff]
    %v2244 = vld [vmem:[%s4 + $0x48] sm:$0xff]
    %v2245 = vld [vmem:[%s4 + $0x50] sm:$0xff]
    %v2246 = vld [vmem:[%s4 + $0x58] sm:$0xff]
    %v2247 = vld [vmem:[%s4 + $0x60] sm:$0xff]
    %v2248 = vld [vmem:[%s4 + $0x68] sm:$0xff]
    %v2249 = vld [vmem:[%s4 + $0x70] sm:$0xff]
    %v2250 = vld [vmem:[%s4 + $0x78] sm:$0xff]
    %v2251 = vld [vmem:[%s5] sm:$0x1]
    %v2253 = vlaneseq
    %v2254 = vshrl.u32 %v2253, 7
    %v2255 = vsub.s32 0, %v2254
    %v2256 = vrot.slane %v2251, %v2255
    %2258 = vmatprep.subr.mxu0 0.0
    %2259 = vmatpush1.msra.mxu0 %v2235
    %2260 = vmatprep.subr.mxu0 0.0
    %2261 = vmatpush1.msra.mxu0 %v2236
    %2262 = vmatprep.subr.mxu0 0.0
    %2263 = vmatpush1.msra.mxu0 %v2237
    %2264 = vmatprep.subr.mxu0 0.0
    %2265 = vmatpush1.msra.mxu0 %v2238
    %2266 = vmatprep.subr.mxu0 0.0
    %2267 = vmatpush1.msra.mxu0 %v2239
    %2268 = vmatprep.subr.mxu0 0.0
    %2269 = vmatpush1.msra.mxu0 %v2240
    %2270 = vmatprep.subr.mxu0 0.0
    %2271 = vmatpush1.msra.mxu0 %v2241
    %2272 = vmatprep.subr.mxu0 0.0
    %2273 = vmatpush1.msra.mxu0 %v2242
    %2274 = vmatprep.subr.mxu0 0.0
    %2275 = vmatpush1.msra.mxu0 %v2243
    %2276 = vmatprep.subr.mxu0 0.0
    %2277 = vmatpush1.msra.mxu0 %v2244
    %2278 = vmatprep.subr.mxu0 0.0
    %2279 = vmatpush1.msra.mxu0 %v2245
    %2280 = vmatprep.subr.mxu0 0.0
    %2281 = vmatpush1.msra.mxu0 %v2246
    %2282 = vmatprep.subr.mxu0 0.0
    %2283 = vmatpush1.msra.mxu0 %v2247
    %2284 = vmatprep.subr.mxu0 0.0
    %2285 = vmatpush1.msra.mxu0 %v2248
    %2286 = vmatprep.subr.mxu0 0.0
    %2287 = vmatpush1.msra.mxu0 %v2249
    %2288 = vmatprep.subr.mxu0 0.0
    %2289 = vmatpush1.msra.mxu0 %v2250
    %2290 = vmatprep.subr.mxu0 0.0
    %2291 = vmatpush1.msra.mxu0 0.0
    %2292 = vmatprep.subr.mxu0 0.0
    %2293 = vmatpush1.msra.mxu0 0.0
    %2294 = vmatprep.subr.mxu0 0.0
    %2295 = vmatpush1.msra.mxu0 0.0
    %2296 = vmatprep.subr.mxu0 0.0
    %2297 = vmatpush1.msra.mxu0 0.0
    %2298 = vmatprep.subr.mxu0 0.0
    %2299 = vmatpush1.msra.mxu0 0.0
    %2300 = vmatprep.subr.mxu0 0.0
    %2301 = vmatpush1.msra.mxu0 0.0
    %2302 = vmatprep.subr.mxu0 0.0
    %2303 = vmatpush1.msra.mxu0 0.0
    %2304 = vmatprep.subr.mxu0 0.0
    %2305 = vmatpush1.msra.mxu0 0.0
    %2306 = vmatprep.subr.mxu0 0.0
    %2307 = vmatpush1.msra.mxu0 0.0
    %2308 = vmatprep.subr.mxu0 0.0
    %2309 = vmatpush1.msra.mxu0 0.0
    %2310 = vmatprep.subr.mxu0 0.0
    %2311 = vmatpush1.msra.mxu0 0.0
    %2312 = vmatprep.subr.mxu0 0.0
    %2313 = vmatpush1.msra.mxu0 0.0
    %2314 = vmatprep.subr.mxu0 0.0
    %2315 = vmatpush1.msra.mxu0 0.0
    %2316 = vmatprep.subr.mxu0 0.0
    %2317 = vmatpush1.msra.mxu0 0.0
    %2318 = vmatprep.subr.mxu0 0.0
    %2319 = vmatpush1.msra.mxu0 0.0
    %2320 = vmatprep.subr.mxu0 0.0
    %2321 = vmatpush1.msra.mxu0 0.0
    %2322 = vmatprep.mubr.f32.mxu0 0.0
    %2323 = vmatmul.mubr.f32.gmra.mrb[0].mxu0 %v2234
    %v2324 = vpop.f32.mrb[0].mxu0
    %v2325 = vadd.f32 %v2256, %v2324
    %v2326 = vpop.f32.mrb[0].mxu0
    %2327 = vdwg.mxu0
    %vm2328 = vcmask 15360
    %2329 = vst.msk [vmem:[%s8] sm:$0xff] %vm2328, %v2325
    %v2330 = vld [vmem:[%s6] sm:$0xff]
    %v2331 = vld [vmem:[%s6 + $0x8] sm:$0xff]
    %v2332 = vld [vmem:[%s6 + $0x10] sm:$0xff]
    %v2333 = vld [vmem:[%s6 + $0x18] sm:$0xff]
    %v2334 = vld [vmem:[%s6 + $0x20] sm:$0xff]
    %v2335 = vld [vmem:[%s6 + $0x28] sm:$0xff]
    %v2336 = vld [vmem:[%s6 + $0x30] sm:$0xff]
    %v2337 = vld [vmem:[%s6 + $0x38] sm:$0xff]
    %v2338 = vld [vmem:[%s6 + $0x40] sm:$0xff]
    %v2339 = vld [vmem:[%s6 + $0x48] sm:$0xff]
    %v2340 = vld [vmem:[%s6 + $0x50] sm:$0xff]
    %v2341 = vld [vmem:[%s6 + $0x58] sm:$0xff]
    %v2342 = vld [vmem:[%s6 + $0x60] sm:$0xff]
    %v2343 = vld [vmem:[%s6 + $0x68] sm:$0xff]
    %v2344 = vld [vmem:[%s6 + $0x70] sm:$0xff]
    %v2345 = vld [vmem:[%s6 + $0x78] sm:$0xff]
    %v2346 = vld [vmem:[#allocation3] sm:$0x1]
    %v2348 = vlaneseq
    %v2349 = vshrl.u32 %v2348, 7
    %v2350 = vsub.s32 0, %v2349
    %v2351 = vrot.slane %v2346, %v2350
    %2353 = vmatprep.subr.mxu0 0.0
    %2354 = vmatpush1.msra.mxu0 %v2330
    %2355 = vmatprep.subr.mxu0 0.0
    %2356 = vmatpush1.msra.mxu0 %v2331
    %2357 = vmatprep.subr.mxu0 0.0
    %2358 = vmatpush1.msra.mxu0 %v2332
    %2359 = vmatprep.subr.mxu0 0.0
    %2360 = vmatpush1.msra.mxu0 %v2333
    %2361 = vmatprep.subr.mxu0 0.0
    %2362 = vmatpush1.msra.mxu0 %v2334
    %2363 = vmatprep.subr.mxu0 0.0
    %2364 = vmatpush1.msra.mxu0 %v2335
    %2365 = vmatprep.subr.mxu0 0.0
    %2366 = vmatpush1.msra.mxu0 %v2336
    %2367 = vmatprep.subr.mxu0 0.0
    %2368 = vmatpush1.msra.mxu0 %v2337
    %2369 = vmatprep.subr.mxu0 0.0
    %2370 = vmatpush1.msra.mxu0 %v2338
    %2371 = vmatprep.subr.mxu0 0.0
    %2372 = vmatpush1.msra.mxu0 %v2339
    %2373 = vmatprep.subr.mxu0 0.0
    %2374 = vmatpush1.msra.mxu0 %v2340
    %2375 = vmatprep.subr.mxu0 0.0
    %2376 = vmatpush1.msra.mxu0 %v2341
    %2377 = vmatprep.subr.mxu0 0.0
    %2378 = vmatpush1.msra.mxu0 %v2342
    %2379 = vmatprep.subr.mxu0 0.0
    %2380 = vmatpush1.msra.mxu0 %v2343
    %2381 = vmatprep.subr.mxu0 0.0
    %2382 = vmatpush1.msra.mxu0 %v2344
    %2383 = vmatprep.subr.mxu0 0.0
    %2384 = vmatpush1.msra.mxu0 %v2345
    %2385 = vmatprep.subr.mxu0 0.0
    %2386 = vmatpush1.msra.mxu0 0.0
    %2387 = vmatprep.subr.mxu0 0.0
    %2388 = vmatpush1.msra.mxu0 0.0
    %2389 = vmatprep.subr.mxu0 0.0
    %2390 = vmatpush1.msra.mxu0 0.0
    %2391 = vmatprep.subr.mxu0 0.0
    %2392 = vmatpush1.msra.mxu0 0.0
    %2393 = vmatprep.subr.mxu0 0.0
    %2394 = vmatpush1.msra.mxu0 0.0
    %2395 = vmatprep.subr.mxu0 0.0
    %2396 = vmatpush1.msra.mxu0 0.0
    %2397 = vmatprep.subr.mxu0 0.0
    %2398 = vmatpush1.msra.mxu0 0.0
    %2399 = vmatprep.subr.mxu0 0.0
    %2400 = vmatpush1.msra.mxu0 0.0
    %2401 = vmatprep.subr.mxu0 0.0
    %2402 = vmatpush1.msra.mxu0 0.0
    %2403 = vmatprep.subr.mxu0 0.0
    %2404 = vmatpush1.msra.mxu0 0.0
    %2405 = vmatprep.subr.mxu0 0.0
    %2406 = vmatpush1.msra.mxu0 0.0
    %2407 = vmatprep.subr.mxu0 0.0
    %2408 = vmatpush1.msra.mxu0 0.0
    %2409 = vmatprep.subr.mxu0 0.0
    %2410 = vmatpush1.msra.mxu0 0.0
    %2411 = vmatprep.subr.mxu0 0.0
    %2412 = vmatpush1.msra.mxu0 0.0
    %2413 = vmatprep.subr.mxu0 0.0
    %2414 = vmatpush1.msra.mxu0 0.0
    %2415 = vmatprep.subr.mxu0 0.0
    %2416 = vmatpush1.msra.mxu0 0.0
    %2417 = vmatprep.mubr.f32.mxu0 0.0
    %2418 = vmatmul.mubr.f32.gmra.mrb[0].mxu0 %v2234
    %v2419 = vpop.f32.mrb[0].mxu0
    %v2420 = vadd.f32 %v2351, %v2419
    %v2421 = vpop.f32.mrb[0].mxu0
    %2422 = vdwg.mxu0
    %vm2423 = vcmask 7168
    %2424 = vst.msk [vmem:[%s9] sm:$0xff] %vm2423, %v2420
    // Predicated region
    $region38: #{tpu_custom_call.1} parent=1 // pred_check
      _
    $region39: #{tpu_custom_call.1} parent=1 // pred_check_branch
      %2426 = sbr.rel (0) target = $region41
    $region40: #{tpu_custom_call.1} parent=1 // pred_region
      _
    $region41: #{tpu_custom_call.1} parent=1 // pred_fallthru
      _
    // Predicated region
    $region42: #{tpu_custom_call.1} parent=1 // pred_check
      _
    $region43: #{tpu_custom_call.1} parent=1 // pred_check_branch
      %2428 = sbr.rel (0) target = $region45
    $region44: #{tpu_custom_call.1} parent=1 // pred_region
      _
    $region45: #{tpu_custom_call.1} parent=1 // pred_fallthru
      _
    // Predicated region
    $region46: #{tpu_custom_call.1} parent=1 // pred_check
      _
    $region47: #{tpu_custom_call.1} parent=1 // pred_check_branch
      %2430 = sbr.rel (0) target = $region49
    $region48: #{tpu_custom_call.1} parent=1 // pred_region
      _
    $region49: #{tpu_custom_call.1} parent=1 // pred_fallthru
      _
    // Predicated region
    $region50: #{tpu_custom_call.1} parent=1 // pred_check
      _
    $region51: #{tpu_custom_call.1} parent=1 // pred_check_branch
      %2432 = sbr.rel (0) target = $region53
    $region52: #{tpu_custom_call.1} parent=1 // pred_region
      _
    $region53: #{tpu_custom_call.1} parent=1 // pred_fallthru
      _
    %2433 = vsyncpa [#allocation5], 1

</llo_original>
